<compile_context>
chip_gen: v5e
topology: v5e:2x2
jax: 0.10.0
libtpu: 0.0.40
codegen_flags: <defaults>
</compile_context>

<pallas_src>
import functools

import jax
import jax.numpy as jnp
from jax.experimental import pallas as pl
from jax.experimental.pallas import tpu as pltpu


def _round_up(v, m):
    return (v + m - 1) // m * m


def _pick_batch_block(batch, seq, target_rows=512):
    """Largest divisor of `batch`, capped at batch//2 (>= 2 grid steps so the parallel
    axis feeds both v7x TensorCores), whose block holds <= target_rows sequence rows."""
    cap = max(1, batch // 2)
    bt = 1
    for cand in range(1, cap + 1):
        if batch % cand == 0 and cand * seq <= target_rows:
            bt = cand
    return bt


def _estimate_vmem_bytes(bt, n, dp, ahd_p, x_bytes, out_bytes, w_bytes,
                         single_buffer_weights):
    """VMEM budget derived from the actual block sizes (not hard-coded)."""
    rows = bt * n
    wbuf = 1 if single_buffer_weights else 2
    io = 2 * rows * dp * (x_bytes + out_bytes)                   # double-buffered x / out
    weights = wbuf * (dp * 3 * ahd_p + ahd_p * dp + dp) * w_bytes
    inter = (rows * 3 * ahd_p * 4                                # fused qkv (f32)
             + rows * ahd_p * w_bytes                            # head-output scratch
             + 2 * rows * dp * 4                                 # x_f32 + y (f32)
             + 2 * bt * n * n * 4)                               # sim + probs (f32)
    total = io + weights + inter
    return int(min(2 * total + (4 << 20), 64 << 20))             # headroom; v7x 64 MiB cap


def _residual_attention_kernel(x_ref, wqkv_ref, wp_ref, b_ref, o_ref, head_ref, *,
                               heads, head_dim, approx_reciprocal):
    bt, n, dp = x_ref.shape
    ahd_p = head_ref.shape[-1]              # padded per-segment (Q|K|V) width
    ahd = heads * head_dim
    cdt = wqkv_ref.dtype                    # MXU operand dtype (bf16 by default)
    rows = bt * n

    x_in = x_ref[...].reshape(rows, dp)     # leading-dim merge: no lane movement
    x_f32 = x_in.astype(jnp.float32)
    x_c = x_in.astype(cdt)

    # One fused, lane-dense QKV projection for all heads and Q/K/V at once.
    qkv = jnp.dot(x_c, wqkv_ref[...], preferred_element_type=jnp.float32)

    # Lane-aligned segment slices (ahd_p is a multiple of 128).
    q = qkv[:, 0 * ahd_p:1 * ahd_p]         # softmax scale already folded into W_q
    k = qkv[:, 1 * ahd_p:2 * ahd_p]
    v = qkv[:, 2 * ahd_p:3 * ahd_p]

    if ahd_p != ahd:
        # Zero padded tail columns so the fused output matmul sees exact zeros.
        head_ref[...] = jnp.zeros_like(head_ref)

    # Per-head attention: heads is small; only small (bt,n,hd)/(bt,n,n) temporaries are
    # live inside the loop.  Batched over the bt batch elements via 3-D einsums.
    for h in range(heads):
        lo, hi = h * head_dim, (h + 1) * head_dim
        qh = q[:, lo:hi].reshape(bt, n, head_dim).astype(cdt)
        kh = k[:, lo:hi].reshape(bt, n, head_dim).astype(cdt)
        vh = v[:, lo:hi].reshape(bt, n, head_dim).astype(cdt)

        sim = jnp.einsum('bqd,bkd->bqk', qh, kh,
                         preferred_element_type=jnp.float32)
        sim = sim - jnp.max(sim, axis=-1, keepdims=True)
        p = jnp.exp(sim)                                   # EUP
        denom = jnp.sum(p, axis=-1, keepdims=True)
        probs = p * pl.reciprocal(denom, approx=approx_reciprocal)
        oh = jnp.einsum('bqk,bkd->bqd', probs.astype(cdt), vh,
                        preferred_element_type=jnp.float32)
        head_ref[:, lo:hi] = oh.reshape(rows, head_dim).astype(cdt)

    # Single fused output projection across all heads, then bias + residual add
    # (Residual.forward: fn(x) + x), and one lane-dense store.
    y = jnp.dot(head_ref[...], wp_ref[...], preferred_element_type=jnp.float32)
    y = y + b_ref[...].astype(jnp.float32) + x_f32
    o_ref[...] = y.reshape(bt, n, dp).astype(o_ref.dtype)


def prepare_residual_attention_params(w_qkv, w_proj, b_proj, *, heads,
                                      compute_dtype=jnp.bfloat16,
                                      lane_multiple=128):
    """One-time weight layout step (hoisted out of the per-call forward).

    w_qkv:  (dim, 3*all_head_dim) with columns ordered [Q | K | V], each segment laid
            out (head, head_dim) — matches nn.Linear(dim, 3*all_head_dim) with y = x @ W.
    w_proj: (all_head_dim, dim);  b_proj: (dim,).

    Stored layout: fused (dp, 3*AHDp) QKV weight (Q columns pre-scaled by
    head_dim**-0.5), (AHDp, dp) output projection, (1, dp) bias — all padded exactly
    with zeros.  `lane_multiple` can be raised to 256 on v6e/v7x when the model's
    all_head_dim allows, to fill both MXU column halves.
    """
    dim, three_ahd = w_qkv.shape
    ahd = three_ahd // 3
    head_dim = ahd // heads
    assert heads * head_dim == ahd and w_proj.shape == (ahd, dim)
    scale = float(head_dim) ** (-0.5)

    dp = _round_up(dim, 128)
    ahd_p = _round_up(ahd, max(lane_multiple, 128))

    w_q, w_k, w_v = jnp.split(w_qkv, 3, axis=1)
    w_q = w_q * scale                                    # fold softmax scale into Q

    def pad_seg(w):                                      # (dim, ahd) -> (dp, ahd_p)
        return jnp.pad(w, ((0, dp - dim), (0, ahd_p - ahd)))

    wqkv = jnp.concatenate([pad_seg(w_q), pad_seg(w_k), pad_seg(w_v)],
                           axis=1).astype(compute_dtype)             # (dp, 3*ahd_p)
    wp = jnp.pad(w_proj, ((0, ahd_p - ahd), (0, dp - dim))).astype(compute_dtype)
    b = jnp.pad(b_proj, (0, dp - dim)).reshape(1, dp).astype(jnp.float32)

    return dict(wqkv=wqkv, wp=wp, b=b, heads=heads, head_dim=head_dim,
                dim=dim, dp=dp, ahd_p=ahd_p, compute_dtype=compute_dtype)


def residual_attention_pallas(x, params, *, approx_reciprocal=True,
                              batch_block=None, x_input_dtype=None,
                              single_buffer_weights=True):
    """Fused Residual(Attention) forward: returns attention(x) + x, shape (B, N, dim)."""
    B, N, dim = x.shape
    assert dim == params['dim']
    dp, ahd_p = params['dp'], params['ahd_p']
    heads, head_dim = params['heads'], params['head_dim']
    cdt = params['compute_dtype']

    # Optional bf16 input stream (v5e HBM relief); residual is still added in f32 in-kernel.
    x_in = x if x_input_dtype is None else x.astype(x_input_dtype)
    pad = dp - dim
    x_p = jnp.pad(x_in, ((0, 0), (0, 0), (0, pad))) if pad else x_in

    bt = batch_block if batch_block is not None else _pick_batch_block(B, N)
    assert B % bt == 0, "batch_block must divide batch"
    grid = (B // bt,)

    kernel = functools.partial(_residual_attention_kernel, heads=heads,
                               head_dim=head_dim,
                               approx_reciprocal=approx_reciprocal)
    vmem_bytes = _estimate_vmem_bytes(
        bt, N, dp, ahd_p, x_p.dtype.itemsize, x.dtype.itemsize,
        jnp.dtype(cdt).itemsize, single_buffer_weights)

    def run(single_buf):
        # Grid-invariant weight/bias blocks: single-buffer them to halve weight VMEM.
        wmode = dict(pipeline_mode=pl.Buffered(buffer_count=1)) if single_buf else {}
        return pl.pallas_call(
            kernel,
            out_shape=jax.ShapeDtypeStruct((B, N, dp), x.dtype),
            grid_spec=pltpu.PrefetchScalarGridSpec(
                num_scalar_prefetch=0,
                grid=grid,
                in_specs=[
                    pl.BlockSpec((bt, N, dp), lambda b: (b, 0, 0)),
                    pl.BlockSpec((dp, 3 * ahd_p), lambda b: (0, 0), **wmode),
                    pl.BlockSpec((ahd_p, dp), lambda b: (0, 0), **wmode),
                    pl.BlockSpec((1, dp), lambda b: (0, 0), **wmode),
                ],
                out_specs=pl.BlockSpec((bt, N, dp), lambda b: (b, 0, 0)),
                scratch_shapes=[pltpu.VMEM((bt * N, ahd_p), cdt)],
            ),
            compiler_params=pltpu.CompilerParams(
                dimension_semantics=("parallel",),
                vmem_limit_bytes=vmem_bytes,
            ),
        )(x_p, params['wqkv'], params['wp'], params['b'])

    if single_buffer_weights:
        try:
            out_p = run(True)
        except Exception:  # fallback for JAX versions without Buffered(1) support
            out_p = run(False)
    else:
        out_p = run(False)

    return out_p if pad == 0 else out_p[..., :dim]


def residual_attention_reference(x, w_qkv, w_proj, b_proj, *, heads,
                                 compute_dtype=jnp.float32):
    """Plain-JAX reference matching the PyTorch Residual(Attention) semantics.
    compute_dtype mirrors the kernel's MXU operand dtype (accumulation in f32)."""
    B, N, dim = x.shape
    ahd = w_proj.shape[0]
    head_dim = ahd // heads
    scale = float(head_dim) ** (-0.5)
    cd = compute_dtype
    f32 = jnp.float32

    qkv = jnp.einsum('bnd,dk->bnk', x.astype(cd), w_qkv.astype(cd),
                     preferred_element_type=f32)
    q, k, v = jnp.split(qkv, 3, axis=-1)

    def to_heads(t):  # 'b n (h d) -> b h n d'
        return t.reshape(B, N, heads, head_dim).transpose(0, 2, 1, 3)

    q = to_heads(q) * scale
    k = to_heads(k)
    v = to_heads(v)
    sim = jnp.einsum('bhid,bhjd->bhij', q.astype(cd), k.astype(cd),
                     preferred_element_type=f32)
    attn = jax.nn.softmax(sim, axis=-1)
    o = jnp.einsum('bhij,bhjd->bhid', attn.astype(cd), v.astype(cd),
                   preferred_element_type=f32)
    o = o.transpose(0, 2, 1, 3).reshape(B, N, ahd)
    y = jnp.einsum('bnk,kd->bnd', o.astype(cd), w_proj.astype(cd),
                   preferred_element_type=f32) + b_proj
    return (y + x).astype(x.dtype)           # Residual: fn(x) + x


if __name__ == "__main__":
    def make_case(key, B, N, dim, heads):
        head_dim = dim // heads
        ahd = head_dim * heads
        kx, kqkv, kproj, kb = jax.random.split(key, 4)
        x = jax.random.normal(kx, (B, N, dim), dtype=jnp.float32)
        w_qkv = jax.random.normal(kqkv, (dim, 3 * ahd), jnp.float32) * (dim ** -0.5)
        w_proj = jax.random.normal(kproj, (ahd, dim), jnp.float32) * (ahd ** -0.5)
        b_proj = jax.random.normal(kb, (dim,), jnp.float32) * 0.01
        return x, w_qkv, w_proj, b_proj

    k1, k2 = jax.random.split(jax.random.PRNGKey(0))

    # 1) Structural-exactness + padding path: dim=32 -> dp=128, AHD=32 -> AHDp=128,
    #    f32 MXU operands, exact reciprocal.
    B, N, dim, heads = 2, 8, 32, 4
    x, w_qkv, w_proj, b_proj = make_case(k1, B, N, dim, heads)
    params_f32 = prepare_residual_attention_params(
        w_qkv, w_proj, b_proj, heads=heads, compute_dtype=jnp.float32)
    out = jax.block_until_ready(
        residual_attention_pallas(x, params_f32, approx_reciprocal=False))
    ref = residual_attention_reference(x, w_qkv, w_proj, b_proj, heads=heads,
                                       compute_dtype=jnp.float32)
    assert out.shape == (B, N, dim)
    assert jnp.allclose(out, ref, atol=1e-3, rtol=1e-3), "f32/padded-path mismatch"

    # 2) Optimized lane-dense path: dim = all_head_dim = 128 (no padding, no output
    #    slice round trip), bf16 MXU operands, EUP approx reciprocal, grid=(2,) so
    #    both v7x TensorCores get work.
    B, N, dim, heads = 4, 8, 128, 4
    x, w_qkv, w_proj, b_proj = make_case(k2, B, N, dim, heads)
    params = prepare_residual_attention_params(
        w_qkv, w_proj, b_proj, heads=heads, compute_dtype=jnp.bfloat16)
    out = jax.block_until_ready(residual_attention_pallas(x, params))
    ref = residual_attention_reference(x, w_qkv, w_proj, b_proj, heads=heads,
                                       compute_dtype=jnp.bfloat16)
    assert out.shape == (B, N, dim)
    assert jnp.allclose(out, ref, atol=2e-2, rtol=2e-2), "bf16 mismatch vs reference"

    print("KERNEL_OK")
</pallas_src>

<mosaic_0001>
module attributes {stable_mosaic.version = 11 : i64} {
  func.func @_residual_attention_kernel(%arg0: i32, %arg1: memref<1x8x128xf32, #tpu.memory_space<vmem>>, %arg2: memref<128x384xf32, #tpu.memory_space<vmem>>, %arg3: memref<128x128xf32, #tpu.memory_space<vmem>>, %arg4: memref<1x128xf32, #tpu.memory_space<vmem>>, %arg5: memref<1x8x128xf32, #tpu.memory_space<vmem>>, %arg6: memref<8x128xf32, #tpu.memory_space<vmem>>) attributes {dimension_semantics = [#tpu.dimension_semantics<parallel>], iteration_bounds = array<i64: 2>, scalar_prefetch = 0 : i64, scratch_operands = 1 : i64, tpu.core_type = #tpu.core_type<tc>, window_params = [{transform_indices = @transform_0, window_bounds = array<i64: 1, 8, 128>}, {pipeline_mode = #tpu.pipeline_mode<synchronous>, transform_indices = @transform_1, window_bounds = array<i64: 128, 384>}, {pipeline_mode = #tpu.pipeline_mode<synchronous>, transform_indices = @transform_2, window_bounds = array<i64: 128, 128>}, {pipeline_mode = #tpu.pipeline_mode<synchronous>, transform_indices = @transform_3, window_bounds = array<i64: 1, 128>}, {transform_indices = @transform_4, window_bounds = array<i64: 1, 8, 128>}]} {
    %c0 = arith.constant 0 : index
    %c0_0 = arith.constant 0 : index
    %c0_1 = arith.constant 0 : index
    %0 = vector.load %arg1[%c0, %c0_0, %c0_1] : memref<1x8x128xf32, #tpu.memory_space<vmem>>, vector<1x8x128xf32>
    %1 = vector.shape_cast %0 : vector<1x8x128xf32> to vector<8x128xf32>
    %c0_2 = arith.constant 0 : index
    %c0_3 = arith.constant 0 : index
    %2 = vector.load %arg2[%c0_2, %c0_3] : memref<128x384xf32, #tpu.memory_space<vmem>>, vector<128x384xf32>
    %cst = arith.constant dense<0.000000e+00> : vector<8x384xf32>
    %3 = tpu.matmul %1, %2, %cst {dimension_numbers = #tpu.dot_dimension_numbers<[1], [0], [0], [1], [0, 0, 1, 1], [], []>} : vector<8x128xf32>, vector<128x384xf32>, vector<8x384xf32> -> vector<8x384xf32>
    %4 = vector.extract_strided_slice %3 {offsets = [0, 0], sizes = [8, 128], strides = [1, 1]} : vector<8x384xf32> to vector<8x128xf32>
    %5 = vector.extract_strided_slice %3 {offsets = [0, 128], sizes = [8, 128], strides = [1, 1]} : vector<8x384xf32> to vector<8x128xf32>
    %6 = vector.extract_strided_slice %3 {offsets = [0, 256], sizes = [8, 128], strides = [1, 1]} : vector<8x384xf32> to vector<8x128xf32>
    %cst_4 = arith.constant 0.000000e+00 : f32
    %7 = vector.broadcast %cst_4 : f32 to vector<8x128xf32>
    %c0_5 = arith.constant 0 : index
    %c0_6 = arith.constant 0 : index
    %8 = vector.load %arg6[%c0_5, %c0_6] : memref<8x128xf32, #tpu.memory_space<vmem>>, vector<8x128xf32>
    tpu.vector_store %arg6[%c0_5, %c0_6], %7 {strides = array<i32>} : memref<8x128xf32, #tpu.memory_space<vmem>>, vector<8x128xf32>,
    %9 = vector.extract_strided_slice %4 {offsets = [0, 0], sizes = [8, 8], strides = [1, 1]} : vector<8x128xf32> to vector<8x8xf32>
    %10 = vector.shape_cast %9 : vector<8x8xf32> to vector<1x8x8xf32>
    %11 = vector.extract_strided_slice %5 {offsets = [0, 0], sizes = [8, 8], strides = [1, 1]} : vector<8x128xf32> to vector<8x8xf32>
    %12 = vector.shape_cast %11 : vector<8x8xf32> to vector<1x8x8xf32>
    %13 = vector.extract_strided_slice %6 {offsets = [0, 0], sizes = [8, 8], strides = [1, 1]} : vector<8x128xf32> to vector<8x8xf32>
    %14 = vector.shape_cast %13 : vector<8x8xf32> to vector<1x8x8xf32>
    "tpu.trace_start"() <{level = 10 : i32, message = "bqd,bkd->bqk"}> : () -> ()
    %cst_7 = arith.constant dense<0.000000e+00> : vector<1x8x8xf32>
    %15 = tpu.matmul %10, %12, %cst_7 {dimension_numbers = #tpu.dot_dimension_numbers<[2], [2], [1], [1], [0, 0, 0, 1, 1, 1], [0], [0]>} : vector<1x8x8xf32>, vector<1x8x8xf32>, vector<1x8x8xf32> -> vector<1x8x8xf32>
    "tpu.trace_stop"() : () -> ()
    %cst_8 = arith.constant dense<0xFF800000> : vector<1x8xf32>
    %16 = vector.multi_reduction <maximumf>, %15, %cst_8 [2] : vector<1x8x8xf32> to vector<1x8xf32>
    %17 = vector.shape_cast %16 : vector<1x8xf32> to vector<1x8x1xf32>
    %18 = vector.broadcast %17 : vector<1x8x1xf32> to vector<1x8x8xf32>
    %19 = arith.subf %15, %18 : vector<1x8x8xf32>
    %20 = math.exp %19 : vector<1x8x8xf32>
    %cst_9 = arith.constant dense<0.000000e+00> : vector<1x8xf32>
    %21 = vector.multi_reduction <add>, %20, %cst_9 [2] : vector<1x8x8xf32> to vector<1x8xf32>
    %22 = vector.shape_cast %21 : vector<1x8xf32> to vector<1x8x1xf32>
    %23 = tpu.reciprocal %22 : vector<1x8x1xf32> -> vector<1x8x1xf32>
    %24 = vector.broadcast %23 : vector<1x8x1xf32> to vector<1x8x8xf32>
    %25 = arith.mulf %20, %24 : vector<1x8x8xf32>
    "tpu.trace_start"() <{level = 10 : i32, message = "bqk,bkd->bqd"}> : () -> ()
    %cst_10 = arith.constant dense<0.000000e+00> : vector<1x8x8xf32>
    %26 = tpu.matmul %25, %14, %cst_10 {dimension_numbers = #tpu.dot_dimension_numbers<[2], [1], [1], [2], [0, 0, 0, 1, 1, 2], [0], [0]>} : vector<1x8x8xf32>, vector<1x8x8xf32>, vector<1x8x8xf32> -> vector<1x8x8xf32>
    "tpu.trace_stop"() : () -> ()
    %27 = vector.shape_cast %26 : vector<1x8x8xf32> to vector<8x8xf32>
    %c0_11 = arith.constant 0 : index
    %c0_12 = arith.constant 0 : index
    %28 = vector.load %arg6[%c0_11, %c0_12] : memref<8x128xf32, #tpu.memory_space<vmem>>, vector<8x8xf32>
    tpu.vector_store %arg6[%c0_11, %c0_12], %27 {strides = array<i32>} : memref<8x128xf32, #tpu.memory_space<vmem>>, vector<8x8xf32>,
    %29 = vector.extract_strided_slice %4 {offsets = [0, 8], sizes = [8, 8], strides = [1, 1]} : vector<8x128xf32> to vector<8x8xf32>
    %30 = vector.shape_cast %29 : vector<8x8xf32> to vector<1x8x8xf32>
    %31 = vector.extract_strided_slice %5 {offsets = [0, 8], sizes = [8, 8], strides = [1, 1]} : vector<8x128xf32> to vector<8x8xf32>
    %32 = vector.shape_cast %31 : vector<8x8xf32> to vector<1x8x8xf32>
    %33 = vector.extract_strided_slice %6 {offsets = [0, 8], sizes = [8, 8], strides = [1, 1]} : vector<8x128xf32> to vector<8x8xf32>
    %34 = vector.shape_cast %33 : vector<8x8xf32> to vector<1x8x8xf32>
    "tpu.trace_start"() <{level = 10 : i32, message = "bqd,bkd->bqk"}> : () -> ()
    %cst_13 = arith.constant dense<0.000000e+00> : vector<1x8x8xf32>
    %35 = tpu.matmul %30, %32, %cst_13 {dimension_numbers = #tpu.dot_dimension_numbers<[2], [2], [1], [1], [0, 0, 0, 1, 1, 1], [0], [0]>} : vector<1x8x8xf32>, vector<1x8x8xf32>, vector<1x8x8xf32> -> vector<1x8x8xf32>
    "tpu.trace_stop"() : () -> ()
    %cst_14 = arith.constant dense<0xFF800000> : vector<1x8xf32>
    %36 = vector.multi_reduction <maximumf>, %35, %cst_14 [2] : vector<1x8x8xf32> to vector<1x8xf32>
    %37 = vector.shape_cast %36 : vector<1x8xf32> to vector<1x8x1xf32>
    %38 = vector.broadcast %37 : vector<1x8x1xf32> to vector<1x8x8xf32>
    %39 = arith.subf %35, %38 : vector<1x8x8xf32>
    %40 = math.exp %39 : vector<1x8x8xf32>
    %cst_15 = arith.constant dense<0.000000e+00> : vector<1x8xf32>
    %41 = vector.multi_reduction <add>, %40, %cst_15 [2] : vector<1x8x8xf32> to vector<1x8xf32>
    %42 = vector.shape_cast %41 : vector<1x8xf32> to vector<1x8x1xf32>
    %43 = tpu.reciprocal %42 : vector<1x8x1xf32> -> vector<1x8x1xf32>
    %44 = vector.broadcast %43 : vector<1x8x1xf32> to vector<1x8x8xf32>
    %45 = arith.mulf %40, %44 : vector<1x8x8xf32>
    "tpu.trace_start"() <{level = 10 : i32, message = "bqk,bkd->bqd"}> : () -> ()
    %cst_16 = arith.constant dense<0.000000e+00> : vector<1x8x8xf32>
    %46 = tpu.matmul %45, %34, %cst_16 {dimension_numbers = #tpu.dot_dimension_numbers<[2], [1], [1], [2], [0, 0, 0, 1, 1, 2], [0], [0]>} : vector<1x8x8xf32>, vector<1x8x8xf32>, vector<1x8x8xf32> -> vector<1x8x8xf32>
    "tpu.trace_stop"() : () -> ()
    %47 = vector.shape_cast %46 : vector<1x8x8xf32> to vector<8x8xf32>
    %c0_17 = arith.constant 0 : index
    %c8 = arith.constant 8 : index
    %48 = vector.load %arg6[%c0_17, %c8] : memref<8x128xf32, #tpu.memory_space<vmem>>, vector<8x8xf32>
    tpu.vector_store %arg6[%c0_17, %c8], %47 {strides = array<i32>} : memref<8x128xf32, #tpu.memory_space<vmem>>, vector<8x8xf32>,
    %49 = vector.extract_strided_slice %4 {offsets = [0, 16], sizes = [8, 8], strides = [1, 1]} : vector<8x128xf32> to vector<8x8xf32>
    %50 = vector.shape_cast %49 : vector<8x8xf32> to vector<1x8x8xf32>
    %51 = vector.extract_strided_slice %5 {offsets = [0, 16], sizes = [8, 8], strides = [1, 1]} : vector<8x128xf32> to vector<8x8xf32>
    %52 = vector.shape_cast %51 : vector<8x8xf32> to vector<1x8x8xf32>
    %53 = vector.extract_strided_slice %6 {offsets = [0, 16], sizes = [8, 8], strides = [1, 1]} : vector<8x128xf32> to vector<8x8xf32>
    %54 = vector.shape_cast %53 : vector<8x8xf32> to vector<1x8x8xf32>
    "tpu.trace_start"() <{level = 10 : i32, message = "bqd,bkd->bqk"}> : () -> ()
    %cst_18 = arith.constant dense<0.000000e+00> : vector<1x8x8xf32>
    %55 = tpu.matmul %50, %52, %cst_18 {dimension_numbers = #tpu.dot_dimension_numbers<[2], [2], [1], [1], [0, 0, 0, 1, 1, 1], [0], [0]>} : vector<1x8x8xf32>, vector<1x8x8xf32>, vector<1x8x8xf32> -> vector<1x8x8xf32>
    "tpu.trace_stop"() : () -> ()
    %cst_19 = arith.constant dense<0xFF800000> : vector<1x8xf32>
    %56 = vector.multi_reduction <maximumf>, %55, %cst_19 [2] : vector<1x8x8xf32> to vector<1x8xf32>
    %57 = vector.shape_cast %56 : vector<1x8xf32> to vector<1x8x1xf32>
    %58 = vector.broadcast %57 : vector<1x8x1xf32> to vector<1x8x8xf32>
    %59 = arith.subf %55, %58 : vector<1x8x8xf32>
    %60 = math.exp %59 : vector<1x8x8xf32>
    %cst_20 = arith.constant dense<0.000000e+00> : vector<1x8xf32>
    %61 = vector.multi_reduction <add>, %60, %cst_20 [2] : vector<1x8x8xf32> to vector<1x8xf32>
    %62 = vector.shape_cast %61 : vector<1x8xf32> to vector<1x8x1xf32>
    %63 = tpu.reciprocal %62 : vector<1x8x1xf32> -> vector<1x8x1xf32>
    %64 = vector.broadcast %63 : vector<1x8x1xf32> to vector<1x8x8xf32>
    %65 = arith.mulf %60, %64 : vector<1x8x8xf32>
    "tpu.trace_start"() <{level = 10 : i32, message = "bqk,bkd->bqd"}> : () -> ()
    %cst_21 = arith.constant dense<0.000000e+00> : vector<1x8x8xf32>
    %66 = tpu.matmul %65, %54, %cst_21 {dimension_numbers = #tpu.dot_dimension_numbers<[2], [1], [1], [2], [0, 0, 0, 1, 1, 2], [0], [0]>} : vector<1x8x8xf32>, vector<1x8x8xf32>, vector<1x8x8xf32> -> vector<1x8x8xf32>
    "tpu.trace_stop"() : () -> ()
    %67 = vector.shape_cast %66 : vector<1x8x8xf32> to vector<8x8xf32>
    %c0_22 = arith.constant 0 : index
    %c16 = arith.constant 16 : index
    %68 = vector.load %arg6[%c0_22, %c16] : memref<8x128xf32, #tpu.memory_space<vmem>>, vector<8x8xf32>
    tpu.vector_store %arg6[%c0_22, %c16], %67 {strides = array<i32>} : memref<8x128xf32, #tpu.memory_space<vmem>>, vector<8x8xf32>,
    %69 = vector.extract_strided_slice %4 {offsets = [0, 24], sizes = [8, 8], strides = [1, 1]} : vector<8x128xf32> to vector<8x8xf32>
    %70 = vector.shape_cast %69 : vector<8x8xf32> to vector<1x8x8xf32>
    %71 = vector.extract_strided_slice %5 {offsets = [0, 24], sizes = [8, 8], strides = [1, 1]} : vector<8x128xf32> to vector<8x8xf32>
    %72 = vector.shape_cast %71 : vector<8x8xf32> to vector<1x8x8xf32>
    %73 = vector.extract_strided_slice %6 {offsets = [0, 24], sizes = [8, 8], strides = [1, 1]} : vector<8x128xf32> to vector<8x8xf32>
    %74 = vector.shape_cast %73 : vector<8x8xf32> to vector<1x8x8xf32>
    "tpu.trace_start"() <{level = 10 : i32, message = "bqd,bkd->bqk"}> : () -> ()
    %cst_23 = arith.constant dense<0.000000e+00> : vector<1x8x8xf32>
    %75 = tpu.matmul %70, %72, %cst_23 {dimension_numbers = #tpu.dot_dimension_numbers<[2], [2], [1], [1], [0, 0, 0, 1, 1, 1], [0], [0]>} : vector<1x8x8xf32>, vector<1x8x8xf32>, vector<1x8x8xf32> -> vector<1x8x8xf32>
    "tpu.trace_stop"() : () -> ()
    %cst_24 = arith.constant dense<0xFF800000> : vector<1x8xf32>
    %76 = vector.multi_reduction <maximumf>, %75, %cst_24 [2] : vector<1x8x8xf32> to vector<1x8xf32>
    %77 = vector.shape_cast %76 : vector<1x8xf32> to vector<1x8x1xf32>
    %78 = vector.broadcast %77 : vector<1x8x1xf32> to vector<1x8x8xf32>
    %79 = arith.subf %75, %78 : vector<1x8x8xf32>
    %80 = math.exp %79 : vector<1x8x8xf32>
    %cst_25 = arith.constant dense<0.000000e+00> : vector<1x8xf32>
    %81 = vector.multi_reduction <add>, %80, %cst_25 [2] : vector<1x8x8xf32> to vector<1x8xf32>
    %82 = vector.shape_cast %81 : vector<1x8xf32> to vector<1x8x1xf32>
    %83 = tpu.reciprocal %82 : vector<1x8x1xf32> -> vector<1x8x1xf32>
    %84 = vector.broadcast %83 : vector<1x8x1xf32> to vector<1x8x8xf32>
    %85 = arith.mulf %80, %84 : vector<1x8x8xf32>
    "tpu.trace_start"() <{level = 10 : i32, message = "bqk,bkd->bqd"}> : () -> ()
    %cst_26 = arith.constant dense<0.000000e+00> : vector<1x8x8xf32>
    %86 = tpu.matmul %85, %74, %cst_26 {dimension_numbers = #tpu.dot_dimension_numbers<[2], [1], [1], [2], [0, 0, 0, 1, 1, 2], [0], [0]>} : vector<1x8x8xf32>, vector<1x8x8xf32>, vector<1x8x8xf32> -> vector<1x8x8xf32>
    "tpu.trace_stop"() : () -> ()
    %87 = vector.shape_cast %86 : vector<1x8x8xf32> to vector<8x8xf32>
    %c0_27 = arith.constant 0 : index
    %c24 = arith.constant 24 : index
    %88 = vector.load %arg6[%c0_27, %c24] : memref<8x128xf32, #tpu.memory_space<vmem>>, vector<8x8xf32>
    tpu.vector_store %arg6[%c0_27, %c24], %87 {strides = array<i32>} : memref<8x128xf32, #tpu.memory_space<vmem>>, vector<8x8xf32>,
    %c0_28 = arith.constant 0 : index
    %c0_29 = arith.constant 0 : index
    %89 = vector.load %arg6[%c0_28, %c0_29] : memref<8x128xf32, #tpu.memory_space<vmem>>, vector<8x128xf32>
    %c0_30 = arith.constant 0 : index
    %c0_31 = arith.constant 0 : index
    %90 = vector.load %arg3[%c0_30, %c0_31] : memref<128x128xf32, #tpu.memory_space<vmem>>, vector<128x128xf32>
    %cst_32 = arith.constant dense<0.000000e+00> : vector<8x128xf32>
    %91 = tpu.matmul %89, %90, %cst_32 {dimension_numbers = #tpu.dot_dimension_numbers<[1], [0], [0], [1], [0, 0, 1, 1], [], []>} : vector<8x128xf32>, vector<128x128xf32>, vector<8x128xf32> -> vector<8x128xf32>
    %c0_33 = arith.constant 0 : index
    %c0_34 = arith.constant 0 : index
    %92 = vector.load %arg4[%c0_33, %c0_34] : memref<1x128xf32, #tpu.memory_space<vmem>>, vector<1x128xf32>
    %93 = vector.broadcast %92 : vector<1x128xf32> to vector<8x128xf32>
    %94 = arith.addf %91, %93 : vector<8x128xf32>
    %95 = arith.addf %94, %1 : vector<8x128xf32>
    %96 = vector.shape_cast %95 : vector<8x128xf32> to vector<1x8x128xf32>
    %c0_35 = arith.constant 0 : index
    %c0_36 = arith.constant 0 : index
    %c0_37 = arith.constant 0 : index
    %97 = vector.load %arg5[%c0_35, %c0_36, %c0_37] : memref<1x8x128xf32, #tpu.memory_space<vmem>>, vector<1x8x128xf32>
    tpu.vector_store %arg5[%c0_35, %c0_36, %c0_37], %96 {strides = array<i32>} : memref<1x8x128xf32, #tpu.memory_space<vmem>>, vector<1x8x128xf32>,
    return
  }
  func.func @transform_0(%arg0: i32) -> (i32, i32, i32) {
    %c0_i32 = arith.constant 0 : i32
    %c0_i32_0 = arith.constant 0 : i32
    %c0_i32_1 = arith.constant 0 : i32
    return %arg0, %c0_i32, %c0_i32_0 : i32, i32, i32
  }
  func.func @transform_1(%arg0: i32) -> (i32, i32) {
    %c0_i32 = arith.constant 0 : i32
    %c0_i32_0 = arith.constant 0 : i32
    %c0_i32_1 = arith.constant 0 : i32
    return %c0_i32, %c0_i32_0 : i32, i32
  }
  func.func @transform_2(%arg0: i32) -> (i32, i32) {
    %c0_i32 = arith.constant 0 : i32
    %c0_i32_0 = arith.constant 0 : i32
    %c0_i32_1 = arith.constant 0 : i32
    return %c0_i32, %c0_i32_0 : i32, i32
  }
  func.func @transform_3(%arg0: i32) -> (i32, i32) {
    %c0_i32 = arith.constant 0 : i32
    %c0_i32_0 = arith.constant 0 : i32
    %c0_i32_1 = arith.constant 0 : i32
    return %c0_i32, %c0_i32_0 : i32, i32
  }
  func.func @transform_4(%arg0: i32) -> (i32, i32, i32) {
    %c0_i32 = arith.constant 0 : i32
    %c0_i32_0 = arith.constant 0 : i32
    %c0_i32_1 = arith.constant 0 : i32
    return %arg0, %c0_i32, %c0_i32_0 : i32, i32, i32
  }
}

module attributes {stable_mosaic.version = 11 : i64} {
  func.func @_residual_attention_kernel(%arg0: i32, %arg1: memref<1x8x128xf32, #tpu.memory_space<vmem>>, %arg2: memref<128x384xf32, #tpu.memory_space<vmem>>, %arg3: memref<128x128xf32, #tpu.memory_space<vmem>>, %arg4: memref<1x128xf32, #tpu.memory_space<vmem>>, %arg5: memref<1x8x128xf32, #tpu.memory_space<vmem>>, %arg6: memref<8x128xf32, #tpu.memory_space<vmem>>) attributes {dimension_semantics = [#tpu.dimension_semantics<parallel>], iteration_bounds = array<i64: 2>, scalar_prefetch = 0 : i64, scratch_operands = 1 : i64, tpu.core_type = #tpu.core_type<tc>, window_params = [{transform_indices = @transform_0, window_bounds = array<i64: 1, 8, 128>}, {pipeline_mode = #tpu.pipeline_mode<synchronous>, transform_indices = @transform_1, window_bounds = array<i64: 128, 384>}, {pipeline_mode = #tpu.pipeline_mode<synchronous>, transform_indices = @transform_2, window_bounds = array<i64: 128, 128>}, {pipeline_mode = #tpu.pipeline_mode<synchronous>, transform_indices = @transform_3, window_bounds = array<i64: 1, 128>}, {transform_indices = @transform_4, window_bounds = array<i64: 1, 8, 128>}]} {
    %c0 = arith.constant 0 : index
    %c0_0 = arith.constant 0 : index
    %c0_1 = arith.constant 0 : index
    %0 = vector.load %arg1[%c0, %c0_0, %c0_1] : memref<1x8x128xf32, #tpu.memory_space<vmem>>, vector<1x8x128xf32>
    %1 = vector.shape_cast %0 : vector<1x8x128xf32> to vector<8x128xf32>
    %c0_2 = arith.constant 0 : index
    %c0_3 = arith.constant 0 : index
    %2 = vector.load %arg2[%c0_2, %c0_3] : memref<128x384xf32, #tpu.memory_space<vmem>>, vector<128x384xf32>
    %cst = arith.constant dense<0.000000e+00> : vector<8x384xf32>
    %3 = tpu.matmul %1, %2, %cst {dimension_numbers = #tpu.dot_dimension_numbers<[1], [0], [0], [1], [0, 0, 1, 1], [], []>} : vector<8x128xf32>, vector<128x384xf32>, vector<8x384xf32> -> vector<8x384xf32>
    %4 = vector.extract_strided_slice %3 {offsets = [0, 0], sizes = [8, 128], strides = [1, 1]} : vector<8x384xf32> to vector<8x128xf32>
    %5 = vector.extract_strided_slice %3 {offsets = [0, 128], sizes = [8, 128], strides = [1, 1]} : vector<8x384xf32> to vector<8x128xf32>
    %6 = vector.extract_strided_slice %3 {offsets = [0, 256], sizes = [8, 128], strides = [1, 1]} : vector<8x384xf32> to vector<8x128xf32>
    %cst_4 = arith.constant 0.000000e+00 : f32
    %7 = vector.broadcast %cst_4 : f32 to vector<8x128xf32>
    %c0_5 = arith.constant 0 : index
    %c0_6 = arith.constant 0 : index
    %8 = vector.load %arg6[%c0_5, %c0_6] : memref<8x128xf32, #tpu.memory_space<vmem>>, vector<8x128xf32>
    tpu.vector_store %arg6[%c0_5, %c0_6], %7 {strides = array<i32>} : memref<8x128xf32, #tpu.memory_space<vmem>>, vector<8x128xf32>,
    %9 = vector.extract_strided_slice %4 {offsets = [0, 0], sizes = [8, 8], strides = [1, 1]} : vector<8x128xf32> to vector<8x8xf32>
    %10 = vector.shape_cast %9 : vector<8x8xf32> to vector<1x8x8xf32>
    %11 = vector.extract_strided_slice %5 {offsets = [0, 0], sizes = [8, 8], strides = [1, 1]} : vector<8x128xf32> to vector<8x8xf32>
    %12 = vector.shape_cast %11 : vector<8x8xf32> to vector<1x8x8xf32>
    %13 = vector.extract_strided_slice %6 {offsets = [0, 0], sizes = [8, 8], strides = [1, 1]} : vector<8x128xf32> to vector<8x8xf32>
    %14 = vector.shape_cast %13 : vector<8x8xf32> to vector<1x8x8xf32>
    "tpu.trace_start"() <{level = 10 : i32, message = "bqd,bkd->bqk"}> : () -> ()
    %cst_7 = arith.constant dense<0.000000e+00> : vector<1x8x8xf32>
    %15 = tpu.matmul %10, %12, %cst_7 {dimension_numbers = #tpu.dot_dimension_numbers<[2], [2], [1], [1], [0, 0, 0, 1, 1, 1], [0], [0]>} : vector<1x8x8xf32>, vector<1x8x8xf32>, vector<1x8x8xf32> -> vector<1x8x8xf32>
    "tpu.trace_stop"() : () -> ()
    %cst_8 = arith.constant dense<0xFF800000> : vector<1x8xf32>
    %16 = vector.multi_reduction <maximumf>, %15, %cst_8 [2] : vector<1x8x8xf32> to vector<1x8xf32>
    %17 = vector.shape_cast %16 : vector<1x8xf32> to vector<1x8x1xf32>
    %18 = vector.broadcast %17 : vector<1x8x1xf32> to vector<1x8x8xf32>
    %19 = arith.subf %15, %18 : vector<1x8x8xf32>
    %20 = math.exp %19 : vector<1x8x8xf32>
    %cst_9 = arith.constant dense<0.000000e+00> : vector<1x8xf32>
    %21 = vector.multi_reduction <add>, %20, %cst_9 [2] : vector<1x8x8xf32> to vector<1x8xf32>
    %22 = vector.shape_cast %21 : vector<1x8xf32> to vector<1x8x1xf32>
    %23 = tpu.reciprocal %22 : vector<1x8x1xf32> -> vector<1x8x1xf32>
    %24 = vector.broadcast %23 : vector<1x8x1xf32> to vector<1x8x8xf32>
    %25 = arith.mulf %20, %24 : vector<1x8x8xf32>
    "tpu.trace_start"() <{level = 10 : i32, message = "bqk,bkd->bqd"}> : () -> ()
    %cst_10 = arith.constant dense<0.000000e+00> : vector<1x8x8xf32>
    %26 = tpu.matmul %25, %14, %cst_10 {dimension_numbers = #tpu.dot_dimension_numbers<[2], [1], [1], [2], [0, 0, 0, 1, 1, 2], [0], [0]>} : vector<1x8x8xf32>, vector<1x8x8xf32>, vector<1x8x8xf32> -> vector<1x8x8xf32>
    "tpu.trace_stop"() : () -> ()
    %27 = vector.shape_cast %26 : vector<1x8x8xf32> to vector<8x8xf32>
    %c0_11 = arith.constant 0 : index
    %c0_12 = arith.constant 0 : index
    %28 = vector.load %arg6[%c0_11, %c0_12] : memref<8x128xf32, #tpu.memory_space<vmem>>, vector<8x8xf32>
    tpu.vector_store %arg6[%c0_11, %c0_12], %27 {strides = array<i32>} : memref<8x128xf32, #tpu.memory_space<vmem>>, vector<8x8xf32>,
    %29 = vector.extract_strided_slice %4 {offsets = [0, 8], sizes = [8, 8], strides = [1, 1]} : vector<8x128xf32> to vector<8x8xf32>
    %30 = vector.shape_cast %29 : vector<8x8xf32> to vector<1x8x8xf32>
    %31 = vector.extract_strided_slice %5 {offsets = [0, 8], sizes = [8, 8], strides = [1, 1]} : vector<8x128xf32> to vector<8x8xf32>
    %32 = vector.shape_cast %31 : vector<8x8xf32> to vector<1x8x8xf32>
    %33 = vector.extract_strided_slice %6 {offsets = [0, 8], sizes = [8, 8], strides = [1, 1]} : vector<8x128xf32> to vector<8x8xf32>
    %34 = vector.shape_cast %33 : vector<8x8xf32> to vector<1x8x8xf32>
    "tpu.trace_start"() <{level = 10 : i32, message = "bqd,bkd->bqk"}> : () -> ()
    %cst_13 = arith.constant dense<0.000000e+00> : vector<1x8x8xf32>
    %35 = tpu.matmul %30, %32, %cst_13 {dimension_numbers = #tpu.dot_dimension_numbers<[2], [2], [1], [1], [0, 0, 0, 1, 1, 1], [0], [0]>} : vector<1x8x8xf32>, vector<1x8x8xf32>, vector<1x8x8xf32> -> vector<1x8x8xf32>
    "tpu.trace_stop"() : () -> ()
    %cst_14 = arith.constant dense<0xFF800000> : vector<1x8xf32>
    %36 = vector.multi_reduction <maximumf>, %35, %cst_14 [2] : vector<1x8x8xf32> to vector<1x8xf32>
    %37 = vector.shape_cast %36 : vector<1x8xf32> to vector<1x8x1xf32>
    %38 = vector.broadcast %37 : vector<1x8x1xf32> to vector<1x8x8xf32>
    %39 = arith.subf %35, %38 : vector<1x8x8xf32>
    %40 = math.exp %39 : vector<1x8x8xf32>
    %cst_15 = arith.constant dense<0.000000e+00> : vector<1x8xf32>
    %41 = vector.multi_reduction <add>, %40, %cst_15 [2] : vector<1x8x8xf32> to vector<1x8xf32>
    %42 = vector.shape_cast %41 : vector<1x8xf32> to vector<1x8x1xf32>
    %43 = tpu.reciprocal %42 : vector<1x8x1xf32> -> vector<1x8x1xf32>
    %44 = vector.broadcast %43 : vector<1x8x1xf32> to vector<1x8x8xf32>
    %45 = arith.mulf %40, %44 : vector<1x8x8xf32>
    "tpu.trace_start"() <{level = 10 : i32, message = "bqk,bkd->bqd"}> : () -> ()
    %cst_16 = arith.constant dense<0.000000e+00> : vector<1x8x8xf32>
    %46 = tpu.matmul %45, %34, %cst_16 {dimension_numbers = #tpu.dot_dimension_numbers<[2], [1], [1], [2], [0, 0, 0, 1, 1, 2], [0], [0]>} : vector<1x8x8xf32>, vector<1x8x8xf32>, vector<1x8x8xf32> -> vector<1x8x8xf32>
    "tpu.trace_stop"() : () -> ()
    %47 = vector.shape_cast %46 : vector<1x8x8xf32> to vector<8x8xf32>
    %c0_17 = arith.constant 0 : index
    %c8 = arith.constant 8 : index
    %48 = vector.load %arg6[%c0_17, %c8] : memref<8x128xf32, #tpu.memory_space<vmem>>, vector<8x8xf32>
    tpu.vector_store %arg6[%c0_17, %c8], %47 {strides = array<i32>} : memref<8x128xf32, #tpu.memory_space<vmem>>, vector<8x8xf32>,
    %49 = vector.extract_strided_slice %4 {offsets = [0, 16], sizes = [8, 8], strides = [1, 1]} : vector<8x128xf32> to vector<8x8xf32>
    %50 = vector.shape_cast %49 : vector<8x8xf32> to vector<1x8x8xf32>
    %51 = vector.extract_strided_slice %5 {offsets = [0, 16], sizes = [8, 8], strides = [1, 1]} : vector<8x128xf32> to vector<8x8xf32>
    %52 = vector.shape_cast %51 : vector<8x8xf32> to vector<1x8x8xf32>
    %53 = vector.extract_strided_slice %6 {offsets = [0, 16], sizes = [8, 8], strides = [1, 1]} : vector<8x128xf32> to vector<8x8xf32>
    %54 = vector.shape_cast %53 : vector<8x8xf32> to vector<1x8x8xf32>
    "tpu.trace_start"() <{level = 10 : i32, message = "bqd,bkd->bqk"}> : () -> ()
    %cst_18 = arith.constant dense<0.000000e+00> : vector<1x8x8xf32>
    %55 = tpu.matmul %50, %52, %cst_18 {dimension_numbers = #tpu.dot_dimension_numbers<[2], [2], [1], [1], [0, 0, 0, 1, 1, 1], [0], [0]>} : vector<1x8x8xf32>, vector<1x8x8xf32>, vector<1x8x8xf32> -> vector<1x8x8xf32>
    "tpu.trace_stop"() : () -> ()
    %cst_19 = arith.constant dense<0xFF800000> : vector<1x8xf32>
    %56 = vector.multi_reduction <maximumf>, %55, %cst_19 [2] : vector<1x8x8xf32> to vector<1x8xf32>
    %57 = vector.shape_cast %56 : vector<1x8xf32> to vector<1x8x1xf32>
    %58 = vector.broadcast %57 : vector<1x8x1xf32> to vector<1x8x8xf32>
    %59 = arith.subf %55, %58 : vector<1x8x8xf32>
    %60 = math.exp %59 : vector<1x8x8xf32>
    %cst_20 = arith.constant dense<0.000000e+00> : vector<1x8xf32>
    %61 = vector.multi_reduction <add>, %60, %cst_20 [2] : vector<1x8x8xf32> to vector<1x8xf32>
    %62 = vector.shape_cast %61 : vector<1x8xf32> to vector<1x8x1xf32>
    %63 = tpu.reciprocal %62 : vector<1x8x1xf32> -> vector<1x8x1xf32>
    %64 = vector.broadcast %63 : vector<1x8x1xf32> to vector<1x8x8xf32>
    %65 = arith.mulf %60, %64 : vector<1x8x8xf32>
    "tpu.trace_start"() <{level = 10 : i32, message = "bqk,bkd->bqd"}> : () -> ()
    %cst_21 = arith.constant dense<0.000000e+00> : vector<1x8x8xf32>
    %66 = tpu.matmul %65, %54, %cst_21 {dimension_numbers = #tpu.dot_dimension_numbers<[2], [1], [1], [2], [0, 0, 0, 1, 1, 2], [0], [0]>} : vector<1x8x8xf32>, vector<1x8x8xf32>, vector<1x8x8xf32> -> vector<1x8x8xf32>
    "tpu.trace_stop"() : () -> ()
    %67 = vector.shape_cast %66 : vector<1x8x8xf32> to vector<8x8xf32>
    %c0_22 = arith.constant 0 : index
    %c16 = arith.constant 16 : index
    %68 = vector.load %arg6[%c0_22, %c16] : memref<8x128xf32, #tpu.memory_space<vmem>>, vector<8x8xf32>
    tpu.vector_store %arg6[%c0_22, %c16], %67 {strides = array<i32>} : memref<8x128xf32, #tpu.memory_space<vmem>>, vector<8x8xf32>,
    %69 = vector.extract_strided_slice %4 {offsets = [0, 24], sizes = [8, 8], strides = [1, 1]} : vector<8x128xf32> to vector<8x8xf32>
    %70 = vector.shape_cast %69 : vector<8x8xf32> to vector<1x8x8xf32>
    %71 = vector.extract_strided_slice %5 {offsets = [0, 24], sizes = [8, 8], strides = [1, 1]} : vector<8x128xf32> to vector<8x8xf32>
    %72 = vector.shape_cast %71 : vector<8x8xf32> to vector<1x8x8xf32>
    %73 = vector.extract_strided_slice %6 {offsets = [0, 24], sizes = [8, 8], strides = [1, 1]} : vector<8x128xf32> to vector<8x8xf32>
    %74 = vector.shape_cast %73 : vector<8x8xf32> to vector<1x8x8xf32>
    "tpu.trace_start"() <{level = 10 : i32, message = "bqd,bkd->bqk"}> : () -> ()
    %cst_23 = arith.constant dense<0.000000e+00> : vector<1x8x8xf32>
    %75 = tpu.matmul %70, %72, %cst_23 {dimension_numbers = #tpu.dot_dimension_numbers<[2], [2], [1], [1], [0, 0, 0, 1, 1, 1], [0], [0]>} : vector<1x8x8xf32>, vector<1x8x8xf32>, vector<1x8x8xf32> -> vector<1x8x8xf32>
    "tpu.trace_stop"() : () -> ()
    %cst_24 = arith.constant dense<0xFF800000> : vector<1x8xf32>
    %76 = vector.multi_reduction <maximumf>, %75, %cst_24 [2] : vector<1x8x8xf32> to vector<1x8xf32>
    %77 = vector.shape_cast %76 : vector<1x8xf32> to vector<1x8x1xf32>
    %78 = vector.broadcast %77 : vector<1x8x1xf32> to vector<1x8x8xf32>
    %79 = arith.subf %75, %78 : vector<1x8x8xf32>
    %80 = math.exp %79 : vector<1x8x8xf32>
    %cst_25 = arith.constant dense<0.000000e+00> : vector<1x8xf32>
    %81 = vector.multi_reduction <add>, %80, %cst_25 [2] : vector<1x8x8xf32> to vector<1x8xf32>
    %82 = vector.shape_cast %81 : vector<1x8xf32> to vector<1x8x1xf32>
    %83 = tpu.reciprocal %82 : vector<1x8x1xf32> -> vector<1x8x1xf32>
    %84 = vector.broadcast %83 : vector<1x8x1xf32> to vector<1x8x8xf32>
    %85 = arith.mulf %80, %84 : vector<1x8x8xf32>
    "tpu.trace_start"() <{level = 10 : i32, message = "bqk,bkd->bqd"}> : () -> ()
    %cst_26 = arith.constant dense<0.000000e+00> : vector<1x8x8xf32>
    %86 = tpu.matmul %85, %74, %cst_26 {dimension_numbers = #tpu.dot_dimension_numbers<[2], [1], [1], [2], [0, 0, 0, 1, 1, 2], [0], [0]>} : vector<1x8x8xf32>, vector<1x8x8xf32>, vector<1x8x8xf32> -> vector<1x8x8xf32>
    "tpu.trace_stop"() : () -> ()
    %87 = vector.shape_cast %86 : vector<1x8x8xf32> to vector<8x8xf32>
    %c0_27 = arith.constant 0 : index
    %c24 = arith.constant 24 : index
    %88 = vector.load %arg6[%c0_27, %c24] : memref<8x128xf32, #tpu.memory_space<vmem>>, vector<8x8xf32>
    tpu.vector_store %arg6[%c0_27, %c24], %87 {strides = array<i32>} : memref<8x128xf32, #tpu.memory_space<vmem>>, vector<8x8xf32>,
    %c0_28 = arith.constant 0 : index
    %c0_29 = arith.constant 0 : index
    %89 = vector.load %arg6[%c0_28, %c0_29] : memref<8x128xf32, #tpu.memory_space<vmem>>, vector<8x128xf32>
    %c0_30 = arith.constant 0 : index
    %c0_31 = arith.constant 0 : index
    %90 = vector.load %arg3[%c0_30, %c0_31] : memref<128x128xf32, #tpu.memory_space<vmem>>, vector<128x128xf32>
    %cst_32 = arith.constant dense<0.000000e+00> : vector<8x128xf32>
    %91 = tpu.matmul %89, %90, %cst_32 {dimension_numbers = #tpu.dot_dimension_numbers<[1], [0], [0], [1], [0, 0, 1, 1], [], []>} : vector<8x128xf32>, vector<128x128xf32>, vector<8x128xf32> -> vector<8x128xf32>
    %c0_33 = arith.constant 0 : index
    %c0_34 = arith.constant 0 : index
    %92 = vector.load %arg4[%c0_33, %c0_34] : memref<1x128xf32, #tpu.memory_space<vmem>>, vector<1x128xf32>
    %93 = vector.broadcast %92 : vector<1x128xf32> to vector<8x128xf32>
    %94 = arith.addf %91, %93 : vector<8x128xf32>
    %95 = arith.addf %94, %1 : vector<8x128xf32>
    %96 = vector.shape_cast %95 : vector<8x128xf32> to vector<1x8x128xf32>
    %c0_35 = arith.constant 0 : index
    %c0_36 = arith.constant 0 : index
    %c0_37 = arith.constant 0 : index
    %97 = vector.load %arg5[%c0_35, %c0_36, %c0_37] : memref<1x8x128xf32, #tpu.memory_space<vmem>>, vector<1x8x128xf32>
    tpu.vector_store %arg5[%c0_35, %c0_36, %c0_37], %96 {strides = array<i32>} : memref<1x8x128xf32, #tpu.memory_space<vmem>>, vector<1x8x128xf32>,
    return
  }
  func.func @transform_0(%arg0: i32) -> (i32, i32, i32) {
    %c0_i32 = arith.constant 0 : i32
    %c0_i32_0 = arith.constant 0 : i32
    %c0_i32_1 = arith.constant 0 : i32
    return %arg0, %c0_i32, %c0_i32_0 : i32, i32, i32
  }
  func.func @transform_1(%arg0: i32) -> (i32, i32) {
    %c0_i32 = arith.constant 0 : i32
    %c0_i32_0 = arith.constant 0 : i32
    %c0_i32_1 = arith.constant 0 : i32
    return %c0_i32, %c0_i32_0 : i32, i32
  }
  func.func @transform_2(%arg0: i32) -> (i32, i32) {
    %c0_i32 = arith.constant 0 : i32
    %c0_i32_0 = arith.constant 0 : i32
    %c0_i32_1 = arith.constant 0 : i32
    return %c0_i32, %c0_i32_0 : i32, i32
  }
  func.func @transform_3(%arg0: i32) -> (i32, i32) {
    %c0_i32 = arith.constant 0 : i32
    %c0_i32_0 = arith.constant 0 : i32
    %c0_i32_1 = arith.constant 0 : i32
    return %c0_i32, %c0_i32_0 : i32, i32
  }
  func.func @transform_4(%arg0: i32) -> (i32, i32, i32) {
    %c0_i32 = arith.constant 0 : i32
    %c0_i32_0 = arith.constant 0 : i32
    %c0_i32_1 = arith.constant 0 : i32
    return %arg0, %c0_i32, %c0_i32_0 : i32, i32, i32
  }
}

</mosaic_0001>

<llo_original>
// kernel: tpu_custom_call.1
$region0: #{tpu_custom_call.1}
  #allocation0 [shape = 'u32[]', space=smem, size = 0x4, offset = 0x4, fixed_abs, tag = 'smem constant byte address 0x4 - core index']
  #allocation1 [shape = 'u32[72,128]{1,0:T(1,128)}', space=vmem, size = 0x9000, scoped, tag = 'internal scratch']
  #allocation2 [shape = 'f32[8,128]{1,0:T(8,128)}', space=vmem, size = 0x1000, scoped, tag = 'scratch operand']
  %s0 = inlined_call_operand.hbm [shape: f32[2,8,128], index: 0, kind: input, shape index: {}]
  %s1 = inlined_call_operand.hbm [shape: f32[128,384], index: 1, kind: input, shape index: {}]
  %s2 = inlined_call_operand.hbm [shape: f32[128,128], index: 2, kind: input, shape index: {}]
  %s3 = inlined_call_operand.vmem [shape: f32[1,128], index: 3, kind: input, shape index: {}]
  %s4 = inlined_call_operand.hbm [shape: f32[2,8,128], index: 4, kind: output, shape index: {}]
  %s5 = sld [smem:[#allocation0]]
  $region61: #{tpu_custom_call.1} parent=0
    _
  %s7 = ssub.s32 1, %s5
  %s8 = scalar_select 0, %s7, %s5
  $region1: #{tpu_custom_call.1} parent=0
    #allocation3 [shape = 'u8[8192]{0}', space=vmem, size = 0x2000, scoped, tag = 'input window, operand 0']
    #allocation4 [shape = 's32[2]{0}', space=sflag, size = 0x8, scoped, tag = 'scoped memory for tpu_custom_call.1']
    #allocation5 [shape = 's32[2]{0}', space=sflag, size = 0x8, scoped, tag = 'scoped memory for tpu_custom_call.1']
    #allocation6 [shape = 'u8[196608]{0}', space=vmem, size = 0x30000, scoped, tag = 'input window, operand 1, single buffered']
    #allocation7 [shape = 's32[1]{0}', space=sflag, size = 0x4, scoped, tag = 'scoped memory for tpu_custom_call.1']
    #allocation8 [shape = 'u8[65536]{0}', space=vmem, size = 0x10000, scoped, tag = 'input window, operand 2, single buffered']
    #allocation9 [shape = 'u8[8192]{0}', space=vmem, size = 0x2000, scoped, tag = 'output window, operand 0']
    %9 = vsyncpa [#allocation4], 0
    %s10 = scalar_lea.sflag [#allocation4], 1
    %11 = vsyncpa %s10, 0
    %12 = vsyncpa [#allocation7], 0
    %13 = vsyncpa [#allocation5], 0
    %s14 = scalar_lea.sflag [#allocation5], 1
    %15 = vsyncpa %s14, 0
    loop: start=0, step=1, limit=4
    $region2: #{tpu_custom_call.1} parent=1 // loop_pre_header
      _
    $region3: #{tpu_custom_call.1} parent=1 // loop_header
      %s17 = sphi 0, %s21
      %p18 = scmp.ge.s32.totalorder %s17, 4
      %s27 = sphi 0, %s29
      %s30 = sphi 0, %s27
      %s31 = sphi 0, %s30
      %s47 = sphi 0, %s31
      %s51 = sphi 0, %s51
      %s53 = sphi 0, %s51
      %s54 = sphi 0, %s53
      %s68 = sphi 0, %s54
      %s72 = sphi 0, %s72
      %s74 = sphi 0, %s72
      %s75 = sphi 0, %s74
      %s89 = sphi 0, %s75
      %s93 = sphi 0, %s93
      %s95 = sphi 0, %s93
      %s96 = sphi 0, %s95
      %s110 = sphi 0, %s96
      %s116 = sphi 0, %s118
      %s119 = sphi 0, %s116
      %s120 = sphi 0, %s119
      %s136 = sphi 0, %s120
    $region4: #{tpu_custom_call.1} parent=1 // loop_header_branch
      %20 = sbr.rel (%p18) target = $region8
    $region5: #{tpu_custom_call.1} parent=1 // loop_body
      %s22 = ssub.s32 %s17, 1
      %s23 = ssub.s32 %s17, 2
      %s24 = sadd.s32 %s17, 1
      %s25 = ssub.s32 %s17, %s24
      %p26 = scmp.eq.s32.totalorder %s25, 0
      %s28 = sadd.s32 %s27, 1
      %s29 = scalar_select %p26, %s27, %s28
      %p32 = pneg %p26
      %p33 = scmp.eq.s32.totalorder %s17, 1
      %p34 = por %p32, %p33
      %p35 = scmp.ne.s32.totalorder %s27, %s30
      %p36 = scmp.eq.s32.totalorder %s17, 0
      %p37 = por %p35, %p36
      %p38 = scmp.ne.s32.totalorder %s27, %s30
      %p39 = scmp.eq.s32.totalorder %s22, 1
      %p40 = por %p38, %p39
      %p41 = scmp.ne.s32.totalorder %s30, %s31
      %p42 = scmp.eq.s32.totalorder %s22, 0
      %p43 = por %p41, %p42
      %p44 = scmp.ne.s32.totalorder %s30, %s31
      %p45 = scmp.eq.s32.totalorder %s23, 1
      %p46 = por %p44, %p45
      %p48 = scmp.ne.s32.totalorder %s31, %s47
      %p49 = scmp.eq.s32.totalorder %s23, 0
      %p50 = por %p48, %p49
      %s52 = sadd.s32 %s51, 1
      %p55 = scmp.eq.s32.totalorder %s17, 1
      %p56 = scmp.ne.s32.totalorder %s51, %s53
      %p57 = scmp.eq.s32.totalorder %s17, 0
      %p58 = por %p56, %p57
      %p59 = scmp.ne.s32.totalorder %s51, %s53
      %p60 = scmp.eq.s32.totalorder %s22, 1
      %p61 = por %p59, %p60
      %p62 = scmp.ne.s32.totalorder %s53, %s54
      %p63 = scmp.eq.s32.totalorder %s22, 0
      %p64 = por %p62, %p63
      %p65 = scmp.ne.s32.totalorder %s53, %s54
      %p66 = scmp.eq.s32.totalorder %s23, 1
      %p67 = por %p65, %p66
      %p69 = scmp.ne.s32.totalorder %s54, %s68
      %p70 = scmp.eq.s32.totalorder %s23, 0
      %p71 = por %p69, %p70
      %s73 = sadd.s32 %s72, 1
      %p76 = scmp.eq.s32.totalorder %s17, 1
      %p77 = scmp.ne.s32.totalorder %s72, %s74
      %p78 = scmp.eq.s32.totalorder %s17, 0
      %p79 = por %p77, %p78
      %p80 = scmp.ne.s32.totalorder %s72, %s74
      %p81 = scmp.eq.s32.totalorder %s22, 1
      %p82 = por %p80, %p81
      %p83 = scmp.ne.s32.totalorder %s74, %s75
      %p84 = scmp.eq.s32.totalorder %s22, 0
      %p85 = por %p83, %p84
      %p86 = scmp.ne.s32.totalorder %s74, %s75
      %p87 = scmp.eq.s32.totalorder %s23, 1
      %p88 = por %p86, %p87
      %p90 = scmp.ne.s32.totalorder %s75, %s89
      %p91 = scmp.eq.s32.totalorder %s23, 0
      %p92 = por %p90, %p91
      %s94 = sadd.s32 %s93, 1
      %p97 = scmp.eq.s32.totalorder %s17, 1
      %p98 = scmp.ne.s32.totalorder %s93, %s95
      %p99 = scmp.eq.s32.totalorder %s17, 0
      %p100 = por %p98, %p99
      %p101 = scmp.ne.s32.totalorder %s93, %s95
      %p102 = scmp.eq.s32.totalorder %s22, 1
      %p103 = por %p101, %p102
      %p104 = scmp.ne.s32.totalorder %s95, %s96
      %p105 = scmp.eq.s32.totalorder %s22, 0
      %p106 = por %p104, %p105
      %p107 = scmp.ne.s32.totalorder %s95, %s96
      %p108 = scmp.eq.s32.totalorder %s23, 1
      %p109 = por %p107, %p108
      %p111 = scmp.ne.s32.totalorder %s96, %s110
      %p112 = scmp.eq.s32.totalorder %s23, 0
      %p113 = por %p111, %p112
      %s114 = ssub.s32 %s17, %s24
      %p115 = scmp.eq.s32.totalorder %s114, 0
      %s117 = sadd.s32 %s116, 1
      %s118 = scalar_select %p115, %s116, %s117
      %p121 = pneg %p115
      %p122 = scmp.eq.s32.totalorder %s17, 1
      %p123 = por %p121, %p122
      %p124 = scmp.ne.s32.totalorder %s116, %s119
      %p125 = scmp.eq.s32.totalorder %s17, 0
      %p126 = por %p124, %p125
      %p127 = scmp.ne.s32.totalorder %s116, %s119
      %p128 = scmp.eq.s32.totalorder %s22, 1
      %p129 = por %p127, %p128
      %p130 = scmp.ne.s32.totalorder %s119, %s120
      %p131 = scmp.eq.s32.totalorder %s22, 0
      %p132 = por %p130, %p131
      %p133 = scmp.ne.s32.totalorder %s119, %s120
      %p134 = scmp.eq.s32.totalorder %s23, 1
      %p135 = por %p133, %p134
      %p137 = scmp.ne.s32.totalorder %s120, %s136
      %p138 = scmp.eq.s32.totalorder %s23, 0
      %p139 = por %p137, %p138
      %p140 = scmp.le.s32.totalorder 1, %s17
      %p141 = scmp.lt.s32.totalorder %s17, 3
      %p142 = pnand %p140, %p141
      %p143 = pneg %p142
      // Predicated region
      $region9: #{tpu_custom_call.1} parent=5 // pred_check
        _
      $region10: #{tpu_custom_call.1} parent=5 // pred_check_branch
        %145 = sbr.rel (%p142) target = $region12
      $region11: #{tpu_custom_call.1} parent=5 // pred_region
        %s146 = ssub.s32 %s17, 1
        // Predicated region
        $region13: #{tpu_custom_call.1} parent=11 // pred_check
          %p147 = pneg %p64
        $region14: #{tpu_custom_call.1} parent=11 // pred_check_branch
          %149 = sbr.rel (%p147) target = $region16
        $region15: #{tpu_custom_call.1} parent=11 // pred_region
          %151 = vsyncadd [#allocation7], 0
          %s152 = sshll.u32 %s1, 4
          %s153 = int_to_ptr.hbm [resolvable:$true] %s152
          %s154 = sshll.u32 [#allocation6], 4
          %s155 = int_to_ptr.vmem [resolvable:$true] %s154
          %160 = dma.hbm_to_vmem [thread:$0]  %s153, 6144, %s155, [#allocation7], 384, 384, 24
        $region16: #{tpu_custom_call.1} parent=11 // pred_fallthru
          _
        // Predicated region
        $region17: #{tpu_custom_call.1} parent=11 // pred_check
          %p161 = pneg %p85
        $region18: #{tpu_custom_call.1} parent=11 // pred_check_branch
          %163 = sbr.rel (%p161) target = $region20
        $region19: #{tpu_custom_call.1} parent=11 // pred_region
          %165 = vsyncadd [#allocation7], 0
          %s166 = sshll.u32 %s2, 4
          %s167 = int_to_ptr.hbm [resolvable:$true] %s166
          %s168 = sshll.u32 [#allocation8], 4
          %s169 = int_to_ptr.vmem [resolvable:$true] %s168
          %174 = dma.hbm_to_vmem [thread:$0]  %s167, 2048, %s169, [#allocation7], 128, 128, 8
        $region20: #{tpu_custom_call.1} parent=11 // pred_fallthru
          _
        // Predicated region
        $region21: #{tpu_custom_call.1} parent=11 // pred_check
          %p175 = pneg %p106
        $region22: #{tpu_custom_call.1} parent=11 // pred_check_branch
          %177 = sbr.rel (%p175) target = $region24
        $region23: #{tpu_custom_call.1} parent=11 // pred_region
          _
        $region24: #{tpu_custom_call.1} parent=11 // pred_fallthru
          _
      $region12: #{tpu_custom_call.1} parent=5 // pred_fallthru
        _
      %p178 = scmp.lt.s32.totalorder %s17, 2
      // Predicated region
      $region25: #{tpu_custom_call.1} parent=5 // pred_check
        %p179 = pneg %p178
      $region26: #{tpu_custom_call.1} parent=5 // pred_check_branch
        %181 = sbr.rel (%p179) target = $region28
      $region27: #{tpu_custom_call.1} parent=5 // pred_region
        // Predicated region
        $region29: #{tpu_custom_call.1} parent=27 // pred_check
          %p182 = pneg %p37
        $region30: #{tpu_custom_call.1} parent=27 // pred_check_branch
          %184 = sbr.rel (%p182) target = $region32
        $region31: #{tpu_custom_call.1} parent=27 // pred_region
          %s185 = sand.u32 %s27, 1
          %s186 = scalar_lea.sflag [#allocation4], %s185
          %s187 = sand.u32 %s27, 1
          %s188 = smul.addr %s187, 8
          %s189 = scalar_lea.vmem [#allocation3], %s188
          %191 = vsyncadd %s186, 0
          %s192 = smul.addr %s17, 8
          %s193 = scalar_lea.hbm %s0, %s192
          %s195 = sshll.u32 %s193, 4
          %s196 = int_to_ptr.hbm [resolvable:$true] %s195
          %s197 = sshll.u32 %s189, 4
          %s198 = int_to_ptr.vmem [resolvable:$true] %s197
          %200 = dma.hbm_to_vmem [thread:$0]  %s196, 128, %s198, %s186
        $region32: #{tpu_custom_call.1} parent=27 // pred_fallthru
          _
      $region28: #{tpu_custom_call.1} parent=5 // pred_fallthru
        _
      %p201 = scmp.le.s32.totalorder 1, %s17
      %p202 = scmp.lt.s32.totalorder %s17, 3
      %p203 = pnand %p201, %p202
      %p204 = pneg %p203
      // Predicated region
      $region33: #{tpu_custom_call.1} parent=5 // pred_check
        _
      $region34: #{tpu_custom_call.1} parent=5 // pred_check_branch
        %206 = sbr.rel (%p203) target = $region36
      $region35: #{tpu_custom_call.1} parent=5 // pred_region
        %s207 = ssub.s32 %s17, 1
        %s208 = sand.u32 %s30, 1
        %s209 = scalar_lea.sflag [#allocation4], %s208
        %s210 = sand.u32 %s30, 1
        %s211 = smul.addr %s210, 8
        %s212 = scalar_lea.vmem [#allocation3], %s211
        // Predicated region
        $region37: #{tpu_custom_call.1} parent=35 // pred_check
          %p213 = pneg %p43
        $region38: #{tpu_custom_call.1} parent=35 // pred_check_branch
          %215 = sbr.rel (%p213) target = $region40
        $region39: #{tpu_custom_call.1} parent=35 // pred_region
          %217 = dma.done %s209, 128
        $region40: #{tpu_custom_call.1} parent=35 // pred_fallthru
          _
        // Predicated region
        $region41: #{tpu_custom_call.1} parent=35 // pred_check
          %p218 = pneg %p64
        $region42: #{tpu_custom_call.1} parent=35 // pred_check_branch
          %220 = sbr.rel (%p218) target = $region44
        $region43: #{tpu_custom_call.1} parent=35 // pred_region
          %222 = dma.done [#allocation7], 6144
        $region44: #{tpu_custom_call.1} parent=35 // pred_fallthru
          _
        // Predicated region
        $region45: #{tpu_custom_call.1} parent=35 // pred_check
          %p223 = pneg %p85
        $region46: #{tpu_custom_call.1} parent=35 // pred_check_branch
          %225 = sbr.rel (%p223) target = $region48
        $region47: #{tpu_custom_call.1} parent=35 // pred_region
          %227 = dma.done [#allocation7], 2048
        $region48: #{tpu_custom_call.1} parent=35 // pred_fallthru
          _
        %s228 = sand.u32 %s30, 1
        %s229 = scalar_lea.sflag [#allocation4], %s228
        %s230 = sand.u32 %s30, 1
        %s231 = smul.addr %s230, 8
        %s232 = scalar_lea.vmem [#allocation3], %s231
        %p233 = pneg %p43
        %p234 = pneg %p40
        %p235 = pneg %p64
        %p236 = pneg %p61
        %p237 = pneg %p85
        %p238 = pneg %p82
        %p239 = pneg %p106
        %p240 = pneg %p103
        %p241 = pneg %p132
        %p242 = pneg %p129
        %s243 = sand.u32 %s119, 1
        %s244 = scalar_lea.sflag [#allocation5], %s243
        %s245 = sand.u32 %s119, 1
        %s246 = smul.addr %s245, 8
        %s247 = scalar_lea.vmem [#allocation9], %s246
        %v248 = vld [vmem:[%s212] sm:$0xff]
        %v249 = vld [vmem:[#allocation6] sm:$0xff]
        %v250 = vld [vmem:[#allocation6 + $0x8] sm:$0xff]
        %v251 = vld [vmem:[#allocation6 + $0x10] sm:$0xff]
        %v252 = vld [vmem:[#allocation6 + $0x18] sm:$0xff]
        %v253 = vld [vmem:[#allocation6 + $0x20] sm:$0xff]
        %v254 = vld [vmem:[#allocation6 + $0x28] sm:$0xff]
        %v255 = vld [vmem:[#allocation6 + $0x30] sm:$0xff]
        %v256 = vld [vmem:[#allocation6 + $0x38] sm:$0xff]
        %v257 = vld [vmem:[#allocation6 + $0x40] sm:$0xff]
        %v258 = vld [vmem:[#allocation6 + $0x48] sm:$0xff]
        %v259 = vld [vmem:[#allocation6 + $0x50] sm:$0xff]
        %v260 = vld [vmem:[#allocation6 + $0x58] sm:$0xff]
        %v261 = vld [vmem:[#allocation6 + $0x60] sm:$0xff]
        %v262 = vld [vmem:[#allocation6 + $0x68] sm:$0xff]
        %v263 = vld [vmem:[#allocation6 + $0x70] sm:$0xff]
        %v264 = vld [vmem:[#allocation6 + $0x78] sm:$0xff]
        %v265 = vld [vmem:[#allocation6 + $0x80] sm:$0xff]
        %v266 = vld [vmem:[#allocation6 + $0x88] sm:$0xff]
        %v267 = vld [vmem:[#allocation6 + $0x90] sm:$0xff]
        %v268 = vld [vmem:[#allocation6 + $0x98] sm:$0xff]
        %v269 = vld [vmem:[#allocation6 + $0xa0] sm:$0xff]
        %v270 = vld [vmem:[#allocation6 + $0xa8] sm:$0xff]
        %v271 = vld [vmem:[#allocation6 + $0xb0] sm:$0xff]
        %v272 = vld [vmem:[#allocation6 + $0xb8] sm:$0xff]
        %v273 = vld [vmem:[#allocation6 + $0xc0] sm:$0xff]
        %v274 = vld [vmem:[#allocation6 + $0xc8] sm:$0xff]
        %v275 = vld [vmem:[#allocation6 + $0xd0] sm:$0xff]
        %v276 = vld [vmem:[#allocation6 + $0xd8] sm:$0xff]
        %v277 = vld [vmem:[#allocation6 + $0xe0] sm:$0xff]
        %v278 = vld [vmem:[#allocation6 + $0xe8] sm:$0xff]
        %v279 = vld [vmem:[#allocation6 + $0xf0] sm:$0xff]
        %v280 = vld [vmem:[#allocation6 + $0xf8] sm:$0xff]
        %v281 = vld [vmem:[#allocation6 + $0x100] sm:$0xff]
        %v282 = vld [vmem:[#allocation6 + $0x108] sm:$0xff]
        %v283 = vld [vmem:[#allocation6 + $0x110] sm:$0xff]
        %v284 = vld [vmem:[#allocation6 + $0x118] sm:$0xff]
        %v285 = vld [vmem:[#allocation6 + $0x120] sm:$0xff]
        %v286 = vld [vmem:[#allocation6 + $0x128] sm:$0xff]
        %v287 = vld [vmem:[#allocation6 + $0x130] sm:$0xff]
        %v288 = vld [vmem:[#allocation6 + $0x138] sm:$0xff]
        %v289 = vld [vmem:[#allocation6 + $0x140] sm:$0xff]
        %v290 = vld [vmem:[#allocation6 + $0x148] sm:$0xff]
        %v291 = vld [vmem:[#allocation6 + $0x150] sm:$0xff]
        %v292 = vld [vmem:[#allocation6 + $0x158] sm:$0xff]
        %v293 = vld [vmem:[#allocation6 + $0x160] sm:$0xff]
        %v294 = vld [vmem:[#allocation6 + $0x168] sm:$0xff]
        %v295 = vld [vmem:[#allocation6 + $0x170] sm:$0xff]
        %v296 = vld [vmem:[#allocation6 + $0x178] sm:$0xff]
        %297 = vmatpush.msra.mxu0 %v294
        %298 = vmatpush.msra.mxu0 %v291
        %299 = vmatpush.msra.mxu0 %v288
        %300 = vmatpush.msra.mxu0 %v285
        %301 = vmatpush.msra.mxu0 %v282
        %302 = vmatpush.msra.mxu0 %v279
        %303 = vmatpush.msra.mxu0 %v276
        %304 = vmatpush.msra.mxu0 %v273
        %305 = vmatpush.msra.mxu0 %v270
        %306 = vmatpush.msra.mxu0 %v267
        %307 = vmatpush.msra.mxu0 %v264
        %308 = vmatpush.msra.mxu0 %v261
        %309 = vmatpush.msra.mxu0 %v258
        %310 = vmatpush.msra.mxu0 %v255
        %311 = vmatpush.msra.mxu0 %v252
        %312 = vmatpush.msra.mxu0 %v249
        %313 = vmatmul.f32.gmra.mxu0 %v248
        %v314 = vpop.f32.mrf.mxu0
        %v315 = vadd.f32 0.0, %v314
        %316 = vdwg.mxu0
        %317 = vmatpush.msra.mxu0 %v295
        %318 = vmatpush.msra.mxu0 %v292
        %319 = vmatpush.msra.mxu0 %v289
        %320 = vmatpush.msra.mxu0 %v286
        %321 = vmatpush.msra.mxu0 %v283
        %322 = vmatpush.msra.mxu0 %v280
        %323 = vmatpush.msra.mxu0 %v277
        %324 = vmatpush.msra.mxu0 %v274
        %325 = vmatpush.msra.mxu0 %v271
        %326 = vmatpush.msra.mxu0 %v268
        %327 = vmatpush.msra.mxu0 %v265
        %328 = vmatpush.msra.mxu0 %v262
        %329 = vmatpush.msra.mxu0 %v259
        %330 = vmatpush.msra.mxu0 %v256
        %331 = vmatpush.msra.mxu0 %v253
        %332 = vmatpush.msra.mxu0 %v250
        %333 = vmatmul.f32.gmra.mxu0 %v248
        %v334 = vpop.f32.mrf.mxu0
        %v335 = vadd.f32 0.0, %v334
        %336 = vdwg.mxu0
        %337 = vmatpush.msra.mxu0 %v296
        %338 = vmatpush.msra.mxu0 %v293
        %339 = vmatpush.msra.mxu0 %v290
        %340 = vmatpush.msra.mxu0 %v287
        %341 = vmatpush.msra.mxu0 %v284
        %342 = vmatpush.msra.mxu0 %v281
        %343 = vmatpush.msra.mxu0 %v278
        %344 = vmatpush.msra.mxu0 %v275
        %345 = vmatpush.msra.mxu0 %v272
        %346 = vmatpush.msra.mxu0 %v269
        %347 = vmatpush.msra.mxu0 %v266
        %348 = vmatpush.msra.mxu0 %v263
        %349 = vmatpush.msra.mxu0 %v260
        %350 = vmatpush.msra.mxu0 %v257
        %351 = vmatpush.msra.mxu0 %v254
        %352 = vmatpush.msra.mxu0 %v251
        %353 = vmatmul.f32.gmra.mxu0 %v248
        %v354 = vpop.f32.mrf.mxu0
        %v355 = vadd.f32 0.0, %v354
        %356 = vdwg.mxu0
        %357 = vst [vmem:[#allocation2] sm:$0xff] 0.0
        %vm358 = vcmask 64512
        %v360 = vsel %vm358, %v315, 0
        %v363 = vsel %vm358, %v335, 0
        %365 = vmatpush.xpose.msra.mxu0 0.0
        %366 = vmatpush.xpose.msra.mxu0 0.0
        %367 = vmatpush.xpose.msra.mxu0 0.0
        %368 = vmatpush.xpose.msra.mxu0 0.0
        %369 = vmatpush.xpose.msra.mxu0 0.0
        %370 = vmatpush.xpose.msra.mxu0 0.0
        %371 = vmatpush.xpose.msra.mxu0 0.0
        %372 = vmatpush.xpose.msra.mxu0 0.0
        %373 = vmatpush.xpose.msra.mxu0 0.0
        %374 = vmatpush.xpose.msra.mxu0 0.0
        %375 = vmatpush.xpose.msra.mxu0 0.0
        %376 = vmatpush.xpose.msra.mxu0 0.0
        %377 = vmatpush.xpose.msra.mxu0 0.0
        %378 = vmatpush.xpose.msra.mxu0 0.0
        %379 = vmatpush.xpose.msra.mxu0 0.0
        %380 = vmatpush.xpose.msra.mxu0 %v363
        %381 = vmatmul.f32.gmra.mxu0 %v360
        %v382 = vpop.f32.mrf.mxu0
        %v383 = vadd.f32 0.0, %v382
        %384 = vdwg.mxu0
        %v385 = vsel %vm358, %v383, -inf
        %386 = vmax.xlane.f32.xlu0 %v385
        %v387 = vpop.xlane.xlu0 %386
        %v388 = vsub.f32 %v383, %v387
        %v389 = vmul.f32 %v388, 1.442695
        %v390 = vpow.pop %v389
        %v391 = vsel %vm358, %v390, 0.0
        %392 = vadd.xlane.f32.xlu0 %v391
        %v393 = vpop.xlane.xlu0 %392
        %v394 = vrcp.pop %v393
        %v395 = vmul.f32 %v393, %v394
        %v396 = vsub.f32 1.0, %v395
        %v397 = vmul.f32 %v394, %v396
        %v398 = vadd.f32 %v394, %v397
        %vm399 = vweird.f32 %v393
        %vm400 = vweird.f32 %v394
        %vm401 = vmor %vm399, %vm400
        %v402 = vsel %vm401, %v394, %v398
        %v403 = vand.u32 2147483647, %v393
        %vm404 = vcmp.eq.f32.partialorder %v403, 8.507059e+37
        %v405 = vand.u32 %v393, 2147483648
        %v406 = vor.u32 1.1754944e-38, %v405
        %v407 = vsel %vm404, %v406, %v402
        %v408 = vmul.f32 %v390, %v407
        %v410 = vsel %vm358, %v408, 0
        %412 = vmatpush.msra.mxu0 0.0
        %413 = vmatpush.msra.mxu0 0.0
        %414 = vmatpush.msra.mxu0 0.0
        %415 = vmatpush.msra.mxu0 0.0
        %416 = vmatpush.msra.mxu0 0.0
        %417 = vmatpush.msra.mxu0 0.0
        %418 = vmatpush.msra.mxu0 0.0
        %419 = vmatpush.msra.mxu0 0.0
        %420 = vmatpush.msra.mxu0 0.0
        %421 = vmatpush.msra.mxu0 0.0
        %422 = vmatpush.msra.mxu0 0.0
        %423 = vmatpush.msra.mxu0 0.0
        %424 = vmatpush.msra.mxu0 0.0
        %425 = vmatpush.msra.mxu0 0.0
        %426 = vmatpush.msra.mxu0 0.0
        %427 = vmatpush.msra.mxu0 %v355
        %428 = vmatmul.f32.gmra.mxu0 %v410
        %v429 = vpop.f32.mrf.mxu0
        %v430 = vadd.f32 0.0, %v429
        %431 = vdwg.mxu0
        %432 = vst.msk [vmem:[#allocation2] sm:$0xff] %vm358, %v430
        %433 = vrot.lane.b32.xlu0 %v315, 120
        %v434 = vpop.permute.xlu0 %433
        %435 = vrot.lane.b32.xlu0 %v335, 120
        %v436 = vpop.permute.xlu0 %435
        %v437 = vsel %vm358, %v434, 0
        %v439 = vsel %vm358, %v436, 0
        %441 = vmatpush.xpose.msra.mxu0 0.0
        %442 = vmatpush.xpose.msra.mxu0 0.0
        %443 = vmatpush.xpose.msra.mxu0 0.0
        %444 = vmatpush.xpose.msra.mxu0 0.0
        %445 = vmatpush.xpose.msra.mxu0 0.0
        %446 = vmatpush.xpose.msra.mxu0 0.0
        %447 = vmatpush.xpose.msra.mxu0 0.0
        %448 = vmatpush.xpose.msra.mxu0 0.0
        %449 = vmatpush.xpose.msra.mxu0 0.0
        %450 = vmatpush.xpose.msra.mxu0 0.0
        %451 = vmatpush.xpose.msra.mxu0 0.0
        %452 = vmatpush.xpose.msra.mxu0 0.0
        %453 = vmatpush.xpose.msra.mxu0 0.0
        %454 = vmatpush.xpose.msra.mxu0 0.0
        %455 = vmatpush.xpose.msra.mxu0 0.0
        %456 = vmatpush.xpose.msra.mxu0 %v439
        %457 = vmatmul.f32.gmra.mxu0 %v437
        %v458 = vpop.f32.mrf.mxu0
        %v459 = vadd.f32 0.0, %v458
        %460 = vdwg.mxu0
        %v461 = vsel %vm358, %v459, -inf
        %462 = vmax.xlane.f32.xlu0 %v461
        %v463 = vpop.xlane.xlu0 %462
        %v464 = vsub.f32 %v459, %v463
        %v465 = vmul.f32 %v464, 1.442695
        %v466 = vpow.pop %v465
        %v467 = vsel %vm358, %v466, 0.0
        %468 = vadd.xlane.f32.xlu0 %v467
        %v469 = vpop.xlane.xlu0 %468
        %v470 = vrcp.pop %v469
        %v471 = vmul.f32 %v469, %v470
        %v472 = vsub.f32 1.0, %v471
        %v473 = vmul.f32 %v470, %v472
        %v474 = vadd.f32 %v470, %v473
        %vm475 = vweird.f32 %v469
        %vm476 = vweird.f32 %v470
        %vm477 = vmor %vm475, %vm476
        %v478 = vsel %vm477, %v470, %v474
        %v479 = vand.u32 2147483647, %v469
        %vm480 = vcmp.eq.f32.partialorder %v479, 8.507059e+37
        %v481 = vand.u32 %v469, 2147483648
        %v482 = vor.u32 1.1754944e-38, %v481
        %v483 = vsel %vm480, %v482, %v478
        %v484 = vmul.f32 %v466, %v483
        %486 = vrot.lane.b32.xlu0 %v355, 120
        %v487 = vpop.permute.xlu0 %486
        %v490 = vsel %vm358, %v484, 0
        %492 = vmatpush.msra.mxu0 0.0
        %493 = vmatpush.msra.mxu0 0.0
        %494 = vmatpush.msra.mxu0 0.0
        %495 = vmatpush.msra.mxu0 0.0
        %496 = vmatpush.msra.mxu0 0.0
        %497 = vmatpush.msra.mxu0 0.0
        %498 = vmatpush.msra.mxu0 0.0
        %499 = vmatpush.msra.mxu0 0.0
        %500 = vmatpush.msra.mxu0 0.0
        %501 = vmatpush.msra.mxu0 0.0
        %502 = vmatpush.msra.mxu0 0.0
        %503 = vmatpush.msra.mxu0 0.0
        %504 = vmatpush.msra.mxu0 0.0
        %505 = vmatpush.msra.mxu0 0.0
        %506 = vmatpush.msra.mxu0 0.0
        %507 = vmatpush.msra.mxu0 %v487
        %508 = vmatmul.f32.gmra.mxu0 %v490
        %v509 = vpop.f32.mrf.mxu0
        %v510 = vadd.f32 0.0, %v509
        %511 = vdwg.mxu0
        %513 = vrot.lane.b32.xlu0 %v510, 8
        %v514 = vpop.permute.xlu0 %513
        %vm516 = vcmask 130112
        %517 = vst.msk [vmem:[#allocation2] sm:$0xff] %vm516, %v514
        %518 = vrot.lane.b32.xlu0 %v315, 112
        %v519 = vpop.permute.xlu0 %518
        %520 = vrot.lane.b32.xlu0 %v335, 112
        %v521 = vpop.permute.xlu0 %520
        %v522 = vsel %vm358, %v519, 0
        %v524 = vsel %vm358, %v521, 0
        %526 = vmatpush.xpose.msra.mxu0 0.0
        %527 = vmatpush.xpose.msra.mxu0 0.0
        %528 = vmatpush.xpose.msra.mxu0 0.0
        %529 = vmatpush.xpose.msra.mxu0 0.0
        %530 = vmatpush.xpose.msra.mxu0 0.0
        %531 = vmatpush.xpose.msra.mxu0 0.0
        %532 = vmatpush.xpose.msra.mxu0 0.0
        %533 = vmatpush.xpose.msra.mxu0 0.0
        %534 = vmatpush.xpose.msra.mxu0 0.0
        %535 = vmatpush.xpose.msra.mxu0 0.0
        %536 = vmatpush.xpose.msra.mxu0 0.0
        %537 = vmatpush.xpose.msra.mxu0 0.0
        %538 = vmatpush.xpose.msra.mxu0 0.0
        %539 = vmatpush.xpose.msra.mxu0 0.0
        %540 = vmatpush.xpose.msra.mxu0 0.0
        %541 = vmatpush.xpose.msra.mxu0 %v524
        %542 = vmatmul.f32.gmra.mxu0 %v522
        %v543 = vpop.f32.mrf.mxu0
        %v544 = vadd.f32 0.0, %v543
        %545 = vdwg.mxu0
        %v546 = vsel %vm358, %v544, -inf
        %547 = vmax.xlane.f32.xlu0 %v546
        %v548 = vpop.xlane.xlu0 %547
        %v549 = vsub.f32 %v544, %v548
        %v550 = vmul.f32 %v549, 1.442695
        %v551 = vpow.pop %v550
        %v552 = vsel %vm358, %v551, 0.0
        %553 = vadd.xlane.f32.xlu0 %v552
        %v554 = vpop.xlane.xlu0 %553
        %v555 = vrcp.pop %v554
        %v556 = vmul.f32 %v554, %v555
        %v557 = vsub.f32 1.0, %v556
        %v558 = vmul.f32 %v555, %v557
        %v559 = vadd.f32 %v555, %v558
        %vm560 = vweird.f32 %v554
        %vm561 = vweird.f32 %v555
        %vm562 = vmor %vm560, %vm561
        %v563 = vsel %vm562, %v555, %v559
        %v564 = vand.u32 2147483647, %v554
        %vm565 = vcmp.eq.f32.partialorder %v564, 8.507059e+37
        %v566 = vand.u32 %v554, 2147483648
        %v567 = vor.u32 1.1754944e-38, %v566
        %v568 = vsel %vm565, %v567, %v563
        %v569 = vmul.f32 %v551, %v568
        %570 = vrot.lane.b32.xlu0 %v355, 112
        %v571 = vpop.permute.xlu0 %570
        %v574 = vsel %vm358, %v569, 0
        %576 = vmatpush.msra.mxu0 0.0
        %577 = vmatpush.msra.mxu0 0.0
        %578 = vmatpush.msra.mxu0 0.0
        %579 = vmatpush.msra.mxu0 0.0
        %580 = vmatpush.msra.mxu0 0.0
        %581 = vmatpush.msra.mxu0 0.0
        %582 = vmatpush.msra.mxu0 0.0
        %583 = vmatpush.msra.mxu0 0.0
        %584 = vmatpush.msra.mxu0 0.0
        %585 = vmatpush.msra.mxu0 0.0
        %586 = vmatpush.msra.mxu0 0.0
        %587 = vmatpush.msra.mxu0 0.0
        %588 = vmatpush.msra.mxu0 0.0
        %589 = vmatpush.msra.mxu0 0.0
        %590 = vmatpush.msra.mxu0 0.0
        %591 = vmatpush.msra.mxu0 %v571
        %592 = vmatmul.f32.gmra.mxu0 %v574
        %v593 = vpop.f32.mrf.mxu0
        %v594 = vadd.f32 0.0, %v593
        %595 = vdwg.mxu0
        %597 = vrot.lane.b32.xlu0 %v594, 16
        %v598 = vpop.permute.xlu0 %597
        %vm600 = vcmask 195712
        %601 = vst.msk [vmem:[#allocation2] sm:$0xff] %vm600, %v598
        %602 = vrot.lane.b32.xlu0 %v315, 104
        %v603 = vpop.permute.xlu0 %602
        %604 = vrot.lane.b32.xlu0 %v335, 104
        %v605 = vpop.permute.xlu0 %604
        %v606 = vsel %vm358, %v603, 0
        %v608 = vsel %vm358, %v605, 0
        %610 = vmatpush.xpose.msra.mxu0 0.0
        %611 = vmatpush.xpose.msra.mxu0 0.0
        %612 = vmatpush.xpose.msra.mxu0 0.0
        %613 = vmatpush.xpose.msra.mxu0 0.0
        %614 = vmatpush.xpose.msra.mxu0 0.0
        %615 = vmatpush.xpose.msra.mxu0 0.0
        %616 = vmatpush.xpose.msra.mxu0 0.0
        %617 = vmatpush.xpose.msra.mxu0 0.0
        %618 = vmatpush.xpose.msra.mxu0 0.0
        %619 = vmatpush.xpose.msra.mxu0 0.0
        %620 = vmatpush.xpose.msra.mxu0 0.0
        %621 = vmatpush.xpose.msra.mxu0 0.0
        %622 = vmatpush.xpose.msra.mxu0 0.0
        %623 = vmatpush.xpose.msra.mxu0 0.0
        %624 = vmatpush.xpose.msra.mxu0 0.0
        %625 = vmatpush.xpose.msra.mxu0 %v608
        %626 = vmatmul.f32.gmra.mxu0 %v606
        %v627 = vpop.f32.mrf.mxu0
        %v628 = vadd.f32 0.0, %v627
        %629 = vdwg.mxu0
        %v630 = vsel %vm358, %v628, -inf
        %631 = vmax.xlane.f32.xlu0 %v630
        %v632 = vpop.xlane.xlu0 %631
        %v633 = vsub.f32 %v628, %v632
        %v634 = vmul.f32 %v633, 1.442695
        %v635 = vpow.pop %v634
        %v636 = vsel %vm358, %v635, 0.0
        %637 = vadd.xlane.f32.xlu0 %v636
        %v638 = vpop.xlane.xlu0 %637
        %v639 = vrcp.pop %v638
        %v640 = vmul.f32 %v638, %v639
        %v641 = vsub.f32 1.0, %v640
        %v642 = vmul.f32 %v639, %v641
        %v643 = vadd.f32 %v639, %v642
        %vm644 = vweird.f32 %v638
        %vm645 = vweird.f32 %v639
        %vm646 = vmor %vm644, %vm645
        %v647 = vsel %vm646, %v639, %v643
        %v648 = vand.u32 2147483647, %v638
        %vm649 = vcmp.eq.f32.partialorder %v648, 8.507059e+37
        %v650 = vand.u32 %v638, 2147483648
        %v651 = vor.u32 1.1754944e-38, %v650
        %v652 = vsel %vm649, %v651, %v647
        %v653 = vmul.f32 %v635, %v652
        %654 = vrot.lane.b32.xlu0 %v355, 104
        %v655 = vpop.permute.xlu0 %654
        %v658 = vsel %vm358, %v653, 0
        %660 = vmatpush.msra.mxu0 0.0
        %661 = vmatpush.msra.mxu0 0.0
        %662 = vmatpush.msra.mxu0 0.0
        %663 = vmatpush.msra.mxu0 0.0
        %664 = vmatpush.msra.mxu0 0.0
        %665 = vmatpush.msra.mxu0 0.0
        %666 = vmatpush.msra.mxu0 0.0
        %667 = vmatpush.msra.mxu0 0.0
        %668 = vmatpush.msra.mxu0 0.0
        %669 = vmatpush.msra.mxu0 0.0
        %670 = vmatpush.msra.mxu0 0.0
        %671 = vmatpush.msra.mxu0 0.0
        %672 = vmatpush.msra.mxu0 0.0
        %673 = vmatpush.msra.mxu0 0.0
        %674 = vmatpush.msra.mxu0 0.0
        %675 = vmatpush.msra.mxu0 %v655
        %676 = vmatmul.f32.gmra.mxu0 %v658
        %v677 = vpop.f32.mrf.mxu0
        %v678 = vadd.f32 0.0, %v677
        %679 = vdwg.mxu0
        %681 = vrot.lane.b32.xlu0 %v678, 24
        %v682 = vpop.permute.xlu0 %681
        %vm684 = vcmask 261312
        %685 = vst.msk [vmem:[#allocation2] sm:$0xff] %vm684, %v682
        %v686 = vld [vmem:[#allocation2] sm:$0xff]
        %v687 = vld [vmem:[#allocation8] sm:$0xff]
        %v688 = vld [vmem:[#allocation8 + $0x8] sm:$0xff]
        %v689 = vld [vmem:[#allocation8 + $0x10] sm:$0xff]
        %v690 = vld [vmem:[#allocation8 + $0x18] sm:$0xff]
        %v691 = vld [vmem:[#allocation8 + $0x20] sm:$0xff]
        %v692 = vld [vmem:[#allocation8 + $0x28] sm:$0xff]
        %v693 = vld [vmem:[#allocation8 + $0x30] sm:$0xff]
        %v694 = vld [vmem:[#allocation8 + $0x38] sm:$0xff]
        %v695 = vld [vmem:[#allocation8 + $0x40] sm:$0xff]
        %v696 = vld [vmem:[#allocation8 + $0x48] sm:$0xff]
        %v697 = vld [vmem:[#allocation8 + $0x50] sm:$0xff]
        %v698 = vld [vmem:[#allocation8 + $0x58] sm:$0xff]
        %v699 = vld [vmem:[#allocation8 + $0x60] sm:$0xff]
        %v700 = vld [vmem:[#allocation8 + $0x68] sm:$0xff]
        %v701 = vld [vmem:[#allocation8 + $0x70] sm:$0xff]
        %v702 = vld [vmem:[#allocation8 + $0x78] sm:$0xff]
        %v703 = vld [vmem:[%s3] sm:$0x1]
        %v705 = vperm.slane %v703, 0
        %707 = vmatpush.msra.mxu0 %v702
        %708 = vmatpush.msra.mxu0 %v701
        %709 = vmatpush.msra.mxu0 %v700
        %710 = vmatpush.msra.mxu0 %v699
        %711 = vmatpush.msra.mxu0 %v698
        %712 = vmatpush.msra.mxu0 %v697
        %713 = vmatpush.msra.mxu0 %v696
        %714 = vmatpush.msra.mxu0 %v695
        %715 = vmatpush.msra.mxu0 %v694
        %716 = vmatpush.msra.mxu0 %v693
        %717 = vmatpush.msra.mxu0 %v692
        %718 = vmatpush.msra.mxu0 %v691
        %719 = vmatpush.msra.mxu0 %v690
        %720 = vmatpush.msra.mxu0 %v689
        %721 = vmatpush.msra.mxu0 %v688
        %722 = vmatpush.msra.mxu0 %v687
        %723 = vmatmul.f32.gmra.mxu0 %v686
        %v724 = vpop.f32.mrf.mxu0
        %v725 = vadd.f32 %v705, %v724
        %726 = vdwg.mxu0
        %v727 = vadd.f32 %v725, %v248
        %728 = vst [vmem:[%s247] sm:$0xff] %v727
        %s729 = sand.u32 %s119, 1
        %s730 = scalar_lea.sflag [#allocation5], %s729
        %s731 = sand.u32 %s119, 1
        %s732 = smul.addr %s731, 8
        %s733 = scalar_lea.vmem [#allocation9], %s732
        // Predicated region
        $region49: #{tpu_custom_call.1} parent=35 // pred_check
          %p734 = pneg %p129
        $region50: #{tpu_custom_call.1} parent=35 // pred_check_branch
          %736 = sbr.rel (%p734) target = $region52
        $region51: #{tpu_custom_call.1} parent=35 // pred_region
          %738 = vsyncadd %s730, 0
          %s739 = smul.addr %s22, 8
          %s740 = scalar_lea.hbm %s4, %s739
          %s742 = sshll.u32 %s733, 4
          %s743 = int_to_ptr.vmem [resolvable:$true] %s742
          %s744 = sshll.u32 %s740, 4
          %s745 = int_to_ptr.hbm [resolvable:$true] %s744
          %747 = dma.vmem_to_hbm [thread:$0]  %s743, 128, %s745, %s730
        $region52: #{tpu_custom_call.1} parent=35 // pred_fallthru
          _
      $region36: #{tpu_custom_call.1} parent=5 // pred_fallthru
        _
      %p748 = scmp.le.s32.totalorder 2, %s17
      // Predicated region
      $region53: #{tpu_custom_call.1} parent=5 // pred_check
        %p749 = pneg %p748
      $region54: #{tpu_custom_call.1} parent=5 // pred_check_branch
        %751 = sbr.rel (%p749) target = $region56
      $region55: #{tpu_custom_call.1} parent=5 // pred_region
        %s752 = ssub.s32 %s17, 2
        // Predicated region
        $region57: #{tpu_custom_call.1} parent=55 // pred_check
          %p753 = pneg %p135
        $region58: #{tpu_custom_call.1} parent=55 // pred_check_branch
          %755 = sbr.rel (%p753) target = $region60
        $region59: #{tpu_custom_call.1} parent=55 // pred_region
          %s756 = sand.u32 %s120, 1
          %s757 = scalar_lea.sflag [#allocation5], %s756
          %s758 = sand.u32 %s120, 1
          %s759 = smul.addr %s758, 8
          %s760 = scalar_lea.vmem [#allocation9], %s759
          %762 = dma.done %s757, 128
        $region60: #{tpu_custom_call.1} parent=55 // pred_fallthru
          _
      $region56: #{tpu_custom_call.1} parent=5 // pred_fallthru
        _
    $region6: #{tpu_custom_call.1} parent=1 // loop_footer
      %s21 = sadd.s32 1, %s17
    $region7: #{tpu_custom_call.1} parent=1 // loop_footer_branch
      %16 = sbr.rel target = $region3
    $region8: #{tpu_custom_call.1} parent=1 // loop_exit
      _
    %763 = vsyncpa [#allocation4], 1
    %s764 = scalar_lea.sflag [#allocation4], 1
    %765 = vsyncpa %s764, 1
    %766 = vsyncpa [#allocation7], 1
    %767 = vsyncpa [#allocation5], 1
    %s768 = scalar_lea.sflag [#allocation5], 1
    %769 = vsyncpa %s768, 1

// kernel: tpu_custom_call.1
$region0: #{tpu_custom_call.1}
  #allocation0 [shape = 'u32[]', space=smem, size = 0x4, offset = 0x4, fixed_abs, tag = 'smem constant byte address 0x4 - core index']
  #allocation1 [shape = 'u32[72,128]{1,0:T(1,128)}', space=vmem, size = 0x9000, scoped, tag = 'internal scratch']
  #allocation2 [shape = 'f32[8,128]{1,0:T(8,128)}', space=vmem, size = 0x1000, scoped, tag = 'scratch operand']
  %s0 = inlined_call_operand.hbm [shape: f32[2,8,128], index: 0, kind: input, shape index: {}]
  %s1 = inlined_call_operand.hbm [shape: f32[128,384], index: 1, kind: input, shape index: {}]
  %s2 = inlined_call_operand.hbm [shape: f32[128,128], index: 2, kind: input, shape index: {}]
  %s3 = inlined_call_operand.vmem [shape: f32[1,128], index: 3, kind: input, shape index: {}]
  %s4 = inlined_call_operand.hbm [shape: f32[2,8,128], index: 4, kind: output, shape index: {}]
  %s5 = sld [smem:[#allocation0]]
  $region61: #{tpu_custom_call.1} parent=0
    _
  %s7 = ssub.s32 1, %s5
  %s8 = scalar_select 0, %s7, %s5
  $region1: #{tpu_custom_call.1} parent=0
    #allocation3 [shape = 'u8[8192]{0}', space=vmem, size = 0x2000, scoped, tag = 'input window, operand 0']
    #allocation4 [shape = 's32[2]{0}', space=sflag, size = 0x8, scoped, tag = 'scoped memory for tpu_custom_call.1']
    #allocation5 [shape = 's32[2]{0}', space=sflag, size = 0x8, scoped, tag = 'scoped memory for tpu_custom_call.1']
    #allocation6 [shape = 'u8[196608]{0}', space=vmem, size = 0x30000, scoped, tag = 'input window, operand 1, single buffered']
    #allocation7 [shape = 's32[1]{0}', space=sflag, size = 0x4, scoped, tag = 'scoped memory for tpu_custom_call.1']
    #allocation8 [shape = 'u8[65536]{0}', space=vmem, size = 0x10000, scoped, tag = 'input window, operand 2, single buffered']
    #allocation9 [shape = 'u8[8192]{0}', space=vmem, size = 0x2000, scoped, tag = 'output window, operand 0']
    %9 = vsyncpa [#allocation4], 0
    %s10 = scalar_lea.sflag [#allocation4], 1
    %11 = vsyncpa %s10, 0
    %12 = vsyncpa [#allocation7], 0
    %13 = vsyncpa [#allocation5], 0
    %s14 = scalar_lea.sflag [#allocation5], 1
    %15 = vsyncpa %s14, 0
    loop: start=0, step=1, limit=4
    $region2: #{tpu_custom_call.1} parent=1 // loop_pre_header
      _
    $region3: #{tpu_custom_call.1} parent=1 // loop_header
      %s17 = sphi 0, %s21
      %p18 = scmp.ge.s32.totalorder %s17, 4
      %s27 = sphi 0, %s29
      %s30 = sphi 0, %s27
      %s31 = sphi 0, %s30
      %s47 = sphi 0, %s31
      %s51 = sphi 0, %s51
      %s53 = sphi 0, %s51
      %s54 = sphi 0, %s53
      %s68 = sphi 0, %s54
      %s72 = sphi 0, %s72
      %s74 = sphi 0, %s72
      %s75 = sphi 0, %s74
      %s89 = sphi 0, %s75
      %s93 = sphi 0, %s93
      %s95 = sphi 0, %s93
      %s96 = sphi 0, %s95
      %s110 = sphi 0, %s96
      %s116 = sphi 0, %s118
      %s119 = sphi 0, %s116
      %s120 = sphi 0, %s119
      %s136 = sphi 0, %s120
    $region4: #{tpu_custom_call.1} parent=1 // loop_header_branch
      %20 = sbr.rel (%p18) target = $region8
    $region5: #{tpu_custom_call.1} parent=1 // loop_body
      %s22 = ssub.s32 %s17, 1
      %s23 = ssub.s32 %s17, 2
      %s24 = sadd.s32 %s17, 1
      %s25 = ssub.s32 %s17, %s24
      %p26 = scmp.eq.s32.totalorder %s25, 0
      %s28 = sadd.s32 %s27, 1
      %s29 = scalar_select %p26, %s27, %s28
      %p32 = pneg %p26
      %p33 = scmp.eq.s32.totalorder %s17, 1
      %p34 = por %p32, %p33
      %p35 = scmp.ne.s32.totalorder %s27, %s30
      %p36 = scmp.eq.s32.totalorder %s17, 0
      %p37 = por %p35, %p36
      %p38 = scmp.ne.s32.totalorder %s27, %s30
      %p39 = scmp.eq.s32.totalorder %s22, 1
      %p40 = por %p38, %p39
      %p41 = scmp.ne.s32.totalorder %s30, %s31
      %p42 = scmp.eq.s32.totalorder %s22, 0
      %p43 = por %p41, %p42
      %p44 = scmp.ne.s32.totalorder %s30, %s31
      %p45 = scmp.eq.s32.totalorder %s23, 1
      %p46 = por %p44, %p45
      %p48 = scmp.ne.s32.totalorder %s31, %s47
      %p49 = scmp.eq.s32.totalorder %s23, 0
      %p50 = por %p48, %p49
      %s52 = sadd.s32 %s51, 1
      %p55 = scmp.eq.s32.totalorder %s17, 1
      %p56 = scmp.ne.s32.totalorder %s51, %s53
      %p57 = scmp.eq.s32.totalorder %s17, 0
      %p58 = por %p56, %p57
      %p59 = scmp.ne.s32.totalorder %s51, %s53
      %p60 = scmp.eq.s32.totalorder %s22, 1
      %p61 = por %p59, %p60
      %p62 = scmp.ne.s32.totalorder %s53, %s54
      %p63 = scmp.eq.s32.totalorder %s22, 0
      %p64 = por %p62, %p63
      %p65 = scmp.ne.s32.totalorder %s53, %s54
      %p66 = scmp.eq.s32.totalorder %s23, 1
      %p67 = por %p65, %p66
      %p69 = scmp.ne.s32.totalorder %s54, %s68
      %p70 = scmp.eq.s32.totalorder %s23, 0
      %p71 = por %p69, %p70
      %s73 = sadd.s32 %s72, 1
      %p76 = scmp.eq.s32.totalorder %s17, 1
      %p77 = scmp.ne.s32.totalorder %s72, %s74
      %p78 = scmp.eq.s32.totalorder %s17, 0
      %p79 = por %p77, %p78
      %p80 = scmp.ne.s32.totalorder %s72, %s74
      %p81 = scmp.eq.s32.totalorder %s22, 1
      %p82 = por %p80, %p81
      %p83 = scmp.ne.s32.totalorder %s74, %s75
      %p84 = scmp.eq.s32.totalorder %s22, 0
      %p85 = por %p83, %p84
      %p86 = scmp.ne.s32.totalorder %s74, %s75
      %p87 = scmp.eq.s32.totalorder %s23, 1
      %p88 = por %p86, %p87
      %p90 = scmp.ne.s32.totalorder %s75, %s89
      %p91 = scmp.eq.s32.totalorder %s23, 0
      %p92 = por %p90, %p91
      %s94 = sadd.s32 %s93, 1
      %p97 = scmp.eq.s32.totalorder %s17, 1
      %p98 = scmp.ne.s32.totalorder %s93, %s95
      %p99 = scmp.eq.s32.totalorder %s17, 0
      %p100 = por %p98, %p99
      %p101 = scmp.ne.s32.totalorder %s93, %s95
      %p102 = scmp.eq.s32.totalorder %s22, 1
      %p103 = por %p101, %p102
      %p104 = scmp.ne.s32.totalorder %s95, %s96
      %p105 = scmp.eq.s32.totalorder %s22, 0
      %p106 = por %p104, %p105
      %p107 = scmp.ne.s32.totalorder %s95, %s96
      %p108 = scmp.eq.s32.totalorder %s23, 1
      %p109 = por %p107, %p108
      %p111 = scmp.ne.s32.totalorder %s96, %s110
      %p112 = scmp.eq.s32.totalorder %s23, 0
      %p113 = por %p111, %p112
      %s114 = ssub.s32 %s17, %s24
      %p115 = scmp.eq.s32.totalorder %s114, 0
      %s117 = sadd.s32 %s116, 1
      %s118 = scalar_select %p115, %s116, %s117
      %p121 = pneg %p115
      %p122 = scmp.eq.s32.totalorder %s17, 1
      %p123 = por %p121, %p122
      %p124 = scmp.ne.s32.totalorder %s116, %s119
      %p125 = scmp.eq.s32.totalorder %s17, 0
      %p126 = por %p124, %p125
      %p127 = scmp.ne.s32.totalorder %s116, %s119
      %p128 = scmp.eq.s32.totalorder %s22, 1
      %p129 = por %p127, %p128
      %p130 = scmp.ne.s32.totalorder %s119, %s120
      %p131 = scmp.eq.s32.totalorder %s22, 0
      %p132 = por %p130, %p131
      %p133 = scmp.ne.s32.totalorder %s119, %s120
      %p134 = scmp.eq.s32.totalorder %s23, 1
      %p135 = por %p133, %p134
      %p137 = scmp.ne.s32.totalorder %s120, %s136
      %p138 = scmp.eq.s32.totalorder %s23, 0
      %p139 = por %p137, %p138
      %p140 = scmp.le.s32.totalorder 1, %s17
      %p141 = scmp.lt.s32.totalorder %s17, 3
      %p142 = pnand %p140, %p141
      %p143 = pneg %p142
      // Predicated region
      $region9: #{tpu_custom_call.1} parent=5 // pred_check
        _
      $region10: #{tpu_custom_call.1} parent=5 // pred_check_branch
        %145 = sbr.rel (%p142) target = $region12
      $region11: #{tpu_custom_call.1} parent=5 // pred_region
        %s146 = ssub.s32 %s17, 1
        // Predicated region
        $region13: #{tpu_custom_call.1} parent=11 // pred_check
          %p147 = pneg %p64
        $region14: #{tpu_custom_call.1} parent=11 // pred_check_branch
          %149 = sbr.rel (%p147) target = $region16
        $region15: #{tpu_custom_call.1} parent=11 // pred_region
          %151 = vsyncadd [#allocation7], 0
          %s152 = sshll.u32 %s1, 4
          %s153 = int_to_ptr.hbm [resolvable:$true] %s152
          %s154 = sshll.u32 [#allocation6], 4
          %s155 = int_to_ptr.vmem [resolvable:$true] %s154
          %160 = dma.hbm_to_vmem [thread:$0]  %s153, 6144, %s155, [#allocation7], 384, 384, 24
        $region16: #{tpu_custom_call.1} parent=11 // pred_fallthru
          _
        // Predicated region
        $region17: #{tpu_custom_call.1} parent=11 // pred_check
          %p161 = pneg %p85
        $region18: #{tpu_custom_call.1} parent=11 // pred_check_branch
          %163 = sbr.rel (%p161) target = $region20
        $region19: #{tpu_custom_call.1} parent=11 // pred_region
          %165 = vsyncadd [#allocation7], 0
          %s166 = sshll.u32 %s2, 4
          %s167 = int_to_ptr.hbm [resolvable:$true] %s166
          %s168 = sshll.u32 [#allocation8], 4
          %s169 = int_to_ptr.vmem [resolvable:$true] %s168
          %174 = dma.hbm_to_vmem [thread:$0]  %s167, 2048, %s169, [#allocation7], 128, 128, 8
        $region20: #{tpu_custom_call.1} parent=11 // pred_fallthru
          _
        // Predicated region
        $region21: #{tpu_custom_call.1} parent=11 // pred_check
          %p175 = pneg %p106
        $region22: #{tpu_custom_call.1} parent=11 // pred_check_branch
          %177 = sbr.rel (%p175) target = $region24
        $region23: #{tpu_custom_call.1} parent=11 // pred_region
          _
        $region24: #{tpu_custom_call.1} parent=11 // pred_fallthru
          _
      $region12: #{tpu_custom_call.1} parent=5 // pred_fallthru
        _
      %p178 = scmp.lt.s32.totalorder %s17, 2
      // Predicated region
      $region25: #{tpu_custom_call.1} parent=5 // pred_check
        %p179 = pneg %p178
      $region26: #{tpu_custom_call.1} parent=5 // pred_check_branch
        %181 = sbr.rel (%p179) target = $region28
      $region27: #{tpu_custom_call.1} parent=5 // pred_region
        // Predicated region
        $region29: #{tpu_custom_call.1} parent=27 // pred_check
          %p182 = pneg %p37
        $region30: #{tpu_custom_call.1} parent=27 // pred_check_branch
          %184 = sbr.rel (%p182) target = $region32
        $region31: #{tpu_custom_call.1} parent=27 // pred_region
          %s185 = sand.u32 %s27, 1
          %s186 = scalar_lea.sflag [#allocation4], %s185
          %s187 = sand.u32 %s27, 1
          %s188 = smul.addr %s187, 8
          %s189 = scalar_lea.vmem [#allocation3], %s188
          %191 = vsyncadd %s186, 0
          %s192 = smul.addr %s17, 8
          %s193 = scalar_lea.hbm %s0, %s192
          %s195 = sshll.u32 %s193, 4
          %s196 = int_to_ptr.hbm [resolvable:$true] %s195
          %s197 = sshll.u32 %s189, 4
          %s198 = int_to_ptr.vmem [resolvable:$true] %s197
          %200 = dma.hbm_to_vmem [thread:$0]  %s196, 128, %s198, %s186
        $region32: #{tpu_custom_call.1} parent=27 // pred_fallthru
          _
      $region28: #{tpu_custom_call.1} parent=5 // pred_fallthru
        _
      %p201 = scmp.le.s32.totalorder 1, %s17
      %p202 = scmp.lt.s32.totalorder %s17, 3
      %p203 = pnand %p201, %p202
      %p204 = pneg %p203
      // Predicated region
      $region33: #{tpu_custom_call.1} parent=5 // pred_check
        _
      $region34: #{tpu_custom_call.1} parent=5 // pred_check_branch
        %206 = sbr.rel (%p203) target = $region36
      $region35: #{tpu_custom_call.1} parent=5 // pred_region
        %s207 = ssub.s32 %s17, 1
        %s208 = sand.u32 %s30, 1
        %s209 = scalar_lea.sflag [#allocation4], %s208
        %s210 = sand.u32 %s30, 1
        %s211 = smul.addr %s210, 8
        %s212 = scalar_lea.vmem [#allocation3], %s211
        // Predicated region
        $region37: #{tpu_custom_call.1} parent=35 // pred_check
          %p213 = pneg %p43
        $region38: #{tpu_custom_call.1} parent=35 // pred_check_branch
          %215 = sbr.rel (%p213) target = $region40
        $region39: #{tpu_custom_call.1} parent=35 // pred_region
          %217 = dma.done %s209, 128
        $region40: #{tpu_custom_call.1} parent=35 // pred_fallthru
          _
        // Predicated region
        $region41: #{tpu_custom_call.1} parent=35 // pred_check
          %p218 = pneg %p64
        $region42: #{tpu_custom_call.1} parent=35 // pred_check_branch
          %220 = sbr.rel (%p218) target = $region44
        $region43: #{tpu_custom_call.1} parent=35 // pred_region
          %222 = dma.done [#allocation7], 6144
        $region44: #{tpu_custom_call.1} parent=35 // pred_fallthru
          _
        // Predicated region
        $region45: #{tpu_custom_call.1} parent=35 // pred_check
          %p223 = pneg %p85
        $region46: #{tpu_custom_call.1} parent=35 // pred_check_branch
          %225 = sbr.rel (%p223) target = $region48
        $region47: #{tpu_custom_call.1} parent=35 // pred_region
          %227 = dma.done [#allocation7], 2048
        $region48: #{tpu_custom_call.1} parent=35 // pred_fallthru
          _
        %s228 = sand.u32 %s30, 1
        %s229 = scalar_lea.sflag [#allocation4], %s228
        %s230 = sand.u32 %s30, 1
        %s231 = smul.addr %s230, 8
        %s232 = scalar_lea.vmem [#allocation3], %s231
        %p233 = pneg %p43
        %p234 = pneg %p40
        %p235 = pneg %p64
        %p236 = pneg %p61
        %p237 = pneg %p85
        %p238 = pneg %p82
        %p239 = pneg %p106
        %p240 = pneg %p103
        %p241 = pneg %p132
        %p242 = pneg %p129
        %s243 = sand.u32 %s119, 1
        %s244 = scalar_lea.sflag [#allocation5], %s243
        %s245 = sand.u32 %s119, 1
        %s246 = smul.addr %s245, 8
        %s247 = scalar_lea.vmem [#allocation9], %s246
        %v248 = vld [vmem:[%s212] sm:$0xff]
        %v249 = vld [vmem:[#allocation6] sm:$0xff]
        %v250 = vld [vmem:[#allocation6 + $0x8] sm:$0xff]
        %v251 = vld [vmem:[#allocation6 + $0x10] sm:$0xff]
        %v252 = vld [vmem:[#allocation6 + $0x18] sm:$0xff]
        %v253 = vld [vmem:[#allocation6 + $0x20] sm:$0xff]
        %v254 = vld [vmem:[#allocation6 + $0x28] sm:$0xff]
        %v255 = vld [vmem:[#allocation6 + $0x30] sm:$0xff]
        %v256 = vld [vmem:[#allocation6 + $0x38] sm:$0xff]
        %v257 = vld [vmem:[#allocation6 + $0x40] sm:$0xff]
        %v258 = vld [vmem:[#allocation6 + $0x48] sm:$0xff]
        %v259 = vld [vmem:[#allocation6 + $0x50] sm:$0xff]
        %v260 = vld [vmem:[#allocation6 + $0x58] sm:$0xff]
        %v261 = vld [vmem:[#allocation6 + $0x60] sm:$0xff]
        %v262 = vld [vmem:[#allocation6 + $0x68] sm:$0xff]
        %v263 = vld [vmem:[#allocation6 + $0x70] sm:$0xff]
        %v264 = vld [vmem:[#allocation6 + $0x78] sm:$0xff]
        %v265 = vld [vmem:[#allocation6 + $0x80] sm:$0xff]
        %v266 = vld [vmem:[#allocation6 + $0x88] sm:$0xff]
        %v267 = vld [vmem:[#allocation6 + $0x90] sm:$0xff]
        %v268 = vld [vmem:[#allocation6 + $0x98] sm:$0xff]
        %v269 = vld [vmem:[#allocation6 + $0xa0] sm:$0xff]
        %v270 = vld [vmem:[#allocation6 + $0xa8] sm:$0xff]
        %v271 = vld [vmem:[#allocation6 + $0xb0] sm:$0xff]
        %v272 = vld [vmem:[#allocation6 + $0xb8] sm:$0xff]
        %v273 = vld [vmem:[#allocation6 + $0xc0] sm:$0xff]
        %v274 = vld [vmem:[#allocation6 + $0xc8] sm:$0xff]
        %v275 = vld [vmem:[#allocation6 + $0xd0] sm:$0xff]
        %v276 = vld [vmem:[#allocation6 + $0xd8] sm:$0xff]
        %v277 = vld [vmem:[#allocation6 + $0xe0] sm:$0xff]
        %v278 = vld [vmem:[#allocation6 + $0xe8] sm:$0xff]
        %v279 = vld [vmem:[#allocation6 + $0xf0] sm:$0xff]
        %v280 = vld [vmem:[#allocation6 + $0xf8] sm:$0xff]
        %v281 = vld [vmem:[#allocation6 + $0x100] sm:$0xff]
        %v282 = vld [vmem:[#allocation6 + $0x108] sm:$0xff]
        %v283 = vld [vmem:[#allocation6 + $0x110] sm:$0xff]
        %v284 = vld [vmem:[#allocation6 + $0x118] sm:$0xff]
        %v285 = vld [vmem:[#allocation6 + $0x120] sm:$0xff]
        %v286 = vld [vmem:[#allocation6 + $0x128] sm:$0xff]
        %v287 = vld [vmem:[#allocation6 + $0x130] sm:$0xff]
        %v288 = vld [vmem:[#allocation6 + $0x138] sm:$0xff]
        %v289 = vld [vmem:[#allocation6 + $0x140] sm:$0xff]
        %v290 = vld [vmem:[#allocation6 + $0x148] sm:$0xff]
        %v291 = vld [vmem:[#allocation6 + $0x150] sm:$0xff]
        %v292 = vld [vmem:[#allocation6 + $0x158] sm:$0xff]
        %v293 = vld [vmem:[#allocation6 + $0x160] sm:$0xff]
        %v294 = vld [vmem:[#allocation6 + $0x168] sm:$0xff]
        %v295 = vld [vmem:[#allocation6 + $0x170] sm:$0xff]
        %v296 = vld [vmem:[#allocation6 + $0x178] sm:$0xff]
        %297 = vmatpush.msra.mxu0 %v294
        %298 = vmatpush.msra.mxu0 %v291
        %299 = vmatpush.msra.mxu0 %v288
        %300 = vmatpush.msra.mxu0 %v285
        %301 = vmatpush.msra.mxu0 %v282
        %302 = vmatpush.msra.mxu0 %v279
        %303 = vmatpush.msra.mxu0 %v276
        %304 = vmatpush.msra.mxu0 %v273
        %305 = vmatpush.msra.mxu0 %v270
        %306 = vmatpush.msra.mxu0 %v267
        %307 = vmatpush.msra.mxu0 %v264
        %308 = vmatpush.msra.mxu0 %v261
        %309 = vmatpush.msra.mxu0 %v258
        %310 = vmatpush.msra.mxu0 %v255
        %311 = vmatpush.msra.mxu0 %v252
        %312 = vmatpush.msra.mxu0 %v249
        %313 = vmatmul.f32.gmra.mxu0 %v248
        %v314 = vpop.f32.mrf.mxu0
        %v315 = vadd.f32 0.0, %v314
        %316 = vdwg.mxu0
        %317 = vmatpush.msra.mxu0 %v295
        %318 = vmatpush.msra.mxu0 %v292
        %319 = vmatpush.msra.mxu0 %v289
        %320 = vmatpush.msra.mxu0 %v286
        %321 = vmatpush.msra.mxu0 %v283
        %322 = vmatpush.msra.mxu0 %v280
        %323 = vmatpush.msra.mxu0 %v277
        %324 = vmatpush.msra.mxu0 %v274
        %325 = vmatpush.msra.mxu0 %v271
        %326 = vmatpush.msra.mxu0 %v268
        %327 = vmatpush.msra.mxu0 %v265
        %328 = vmatpush.msra.mxu0 %v262
        %329 = vmatpush.msra.mxu0 %v259
        %330 = vmatpush.msra.mxu0 %v256
        %331 = vmatpush.msra.mxu0 %v253
        %332 = vmatpush.msra.mxu0 %v250
        %333 = vmatmul.f32.gmra.mxu0 %v248
        %v334 = vpop.f32.mrf.mxu0
        %v335 = vadd.f32 0.0, %v334
        %336 = vdwg.mxu0
        %337 = vmatpush.msra.mxu0 %v296
        %338 = vmatpush.msra.mxu0 %v293
        %339 = vmatpush.msra.mxu0 %v290
        %340 = vmatpush.msra.mxu0 %v287
        %341 = vmatpush.msra.mxu0 %v284
        %342 = vmatpush.msra.mxu0 %v281
        %343 = vmatpush.msra.mxu0 %v278
        %344 = vmatpush.msra.mxu0 %v275
        %345 = vmatpush.msra.mxu0 %v272
        %346 = vmatpush.msra.mxu0 %v269
        %347 = vmatpush.msra.mxu0 %v266
        %348 = vmatpush.msra.mxu0 %v263
        %349 = vmatpush.msra.mxu0 %v260
        %350 = vmatpush.msra.mxu0 %v257
        %351 = vmatpush.msra.mxu0 %v254
        %352 = vmatpush.msra.mxu0 %v251
        %353 = vmatmul.f32.gmra.mxu0 %v248
        %v354 = vpop.f32.mrf.mxu0
        %v355 = vadd.f32 0.0, %v354
        %356 = vdwg.mxu0
        %357 = vst [vmem:[#allocation2] sm:$0xff] 0.0
        %vm358 = vcmask 64512
        %v360 = vsel %vm358, %v315, 0
        %v363 = vsel %vm358, %v335, 0
        %365 = vmatpush.xpose.msra.mxu0 0.0
        %366 = vmatpush.xpose.msra.mxu0 0.0
        %367 = vmatpush.xpose.msra.mxu0 0.0
        %368 = vmatpush.xpose.msra.mxu0 0.0
        %369 = vmatpush.xpose.msra.mxu0 0.0
        %370 = vmatpush.xpose.msra.mxu0 0.0
        %371 = vmatpush.xpose.msra.mxu0 0.0
        %372 = vmatpush.xpose.msra.mxu0 0.0
        %373 = vmatpush.xpose.msra.mxu0 0.0
        %374 = vmatpush.xpose.msra.mxu0 0.0
        %375 = vmatpush.xpose.msra.mxu0 0.0
        %376 = vmatpush.xpose.msra.mxu0 0.0
        %377 = vmatpush.xpose.msra.mxu0 0.0
        %378 = vmatpush.xpose.msra.mxu0 0.0
        %379 = vmatpush.xpose.msra.mxu0 0.0
        %380 = vmatpush.xpose.msra.mxu0 %v363
        %381 = vmatmul.f32.gmra.mxu0 %v360
        %v382 = vpop.f32.mrf.mxu0
        %v383 = vadd.f32 0.0, %v382
        %384 = vdwg.mxu0
        %v385 = vsel %vm358, %v383, -inf
        %386 = vmax.xlane.f32.xlu0 %v385
        %v387 = vpop.xlane.xlu0 %386
        %v388 = vsub.f32 %v383, %v387
        %v389 = vmul.f32 %v388, 1.442695
        %v390 = vpow.pop %v389
        %v391 = vsel %vm358, %v390, 0.0
        %392 = vadd.xlane.f32.xlu0 %v391
        %v393 = vpop.xlane.xlu0 %392
        %v394 = vrcp.pop %v393
        %v395 = vmul.f32 %v393, %v394
        %v396 = vsub.f32 1.0, %v395
        %v397 = vmul.f32 %v394, %v396
        %v398 = vadd.f32 %v394, %v397
        %vm399 = vweird.f32 %v393
        %vm400 = vweird.f32 %v394
        %vm401 = vmor %vm399, %vm400
        %v402 = vsel %vm401, %v394, %v398
        %v403 = vand.u32 2147483647, %v393
        %vm404 = vcmp.eq.f32.partialorder %v403, 8.507059e+37
        %v405 = vand.u32 %v393, 2147483648
        %v406 = vor.u32 1.1754944e-38, %v405
        %v407 = vsel %vm404, %v406, %v402
        %v408 = vmul.f32 %v390, %v407
        %v410 = vsel %vm358, %v408, 0
        %412 = vmatpush.msra.mxu0 0.0
        %413 = vmatpush.msra.mxu0 0.0
        %414 = vmatpush.msra.mxu0 0.0
        %415 = vmatpush.msra.mxu0 0.0
        %416 = vmatpush.msra.mxu0 0.0
        %417 = vmatpush.msra.mxu0 0.0
        %418 = vmatpush.msra.mxu0 0.0
        %419 = vmatpush.msra.mxu0 0.0
        %420 = vmatpush.msra.mxu0 0.0
        %421 = vmatpush.msra.mxu0 0.0
        %422 = vmatpush.msra.mxu0 0.0
        %423 = vmatpush.msra.mxu0 0.0
        %424 = vmatpush.msra.mxu0 0.0
        %425 = vmatpush.msra.mxu0 0.0
        %426 = vmatpush.msra.mxu0 0.0
        %427 = vmatpush.msra.mxu0 %v355
        %428 = vmatmul.f32.gmra.mxu0 %v410
        %v429 = vpop.f32.mrf.mxu0
        %v430 = vadd.f32 0.0, %v429
        %431 = vdwg.mxu0
        %432 = vst.msk [vmem:[#allocation2] sm:$0xff] %vm358, %v430
        %433 = vrot.lane.b32.xlu0 %v315, 120
        %v434 = vpop.permute.xlu0 %433
        %435 = vrot.lane.b32.xlu0 %v335, 120
        %v436 = vpop.permute.xlu0 %435
        %v437 = vsel %vm358, %v434, 0
        %v439 = vsel %vm358, %v436, 0
        %441 = vmatpush.xpose.msra.mxu0 0.0
        %442 = vmatpush.xpose.msra.mxu0 0.0
        %443 = vmatpush.xpose.msra.mxu0 0.0
        %444 = vmatpush.xpose.msra.mxu0 0.0
        %445 = vmatpush.xpose.msra.mxu0 0.0
        %446 = vmatpush.xpose.msra.mxu0 0.0
        %447 = vmatpush.xpose.msra.mxu0 0.0
        %448 = vmatpush.xpose.msra.mxu0 0.0
        %449 = vmatpush.xpose.msra.mxu0 0.0
        %450 = vmatpush.xpose.msra.mxu0 0.0
        %451 = vmatpush.xpose.msra.mxu0 0.0
        %452 = vmatpush.xpose.msra.mxu0 0.0
        %453 = vmatpush.xpose.msra.mxu0 0.0
        %454 = vmatpush.xpose.msra.mxu0 0.0
        %455 = vmatpush.xpose.msra.mxu0 0.0
        %456 = vmatpush.xpose.msra.mxu0 %v439
        %457 = vmatmul.f32.gmra.mxu0 %v437
        %v458 = vpop.f32.mrf.mxu0
        %v459 = vadd.f32 0.0, %v458
        %460 = vdwg.mxu0
        %v461 = vsel %vm358, %v459, -inf
        %462 = vmax.xlane.f32.xlu0 %v461
        %v463 = vpop.xlane.xlu0 %462
        %v464 = vsub.f32 %v459, %v463
        %v465 = vmul.f32 %v464, 1.442695
        %v466 = vpow.pop %v465
        %v467 = vsel %vm358, %v466, 0.0
        %468 = vadd.xlane.f32.xlu0 %v467
        %v469 = vpop.xlane.xlu0 %468
        %v470 = vrcp.pop %v469
        %v471 = vmul.f32 %v469, %v470
        %v472 = vsub.f32 1.0, %v471
        %v473 = vmul.f32 %v470, %v472
        %v474 = vadd.f32 %v470, %v473
        %vm475 = vweird.f32 %v469
        %vm476 = vweird.f32 %v470
        %vm477 = vmor %vm475, %vm476
        %v478 = vsel %vm477, %v470, %v474
        %v479 = vand.u32 2147483647, %v469
        %vm480 = vcmp.eq.f32.partialorder %v479, 8.507059e+37
        %v481 = vand.u32 %v469, 2147483648
        %v482 = vor.u32 1.1754944e-38, %v481
        %v483 = vsel %vm480, %v482, %v478
        %v484 = vmul.f32 %v466, %v483
        %486 = vrot.lane.b32.xlu0 %v355, 120
        %v487 = vpop.permute.xlu0 %486
        %v490 = vsel %vm358, %v484, 0
        %492 = vmatpush.msra.mxu0 0.0
        %493 = vmatpush.msra.mxu0 0.0
        %494 = vmatpush.msra.mxu0 0.0
        %495 = vmatpush.msra.mxu0 0.0
        %496 = vmatpush.msra.mxu0 0.0
        %497 = vmatpush.msra.mxu0 0.0
        %498 = vmatpush.msra.mxu0 0.0
        %499 = vmatpush.msra.mxu0 0.0
        %500 = vmatpush.msra.mxu0 0.0
        %501 = vmatpush.msra.mxu0 0.0
        %502 = vmatpush.msra.mxu0 0.0
        %503 = vmatpush.msra.mxu0 0.0
        %504 = vmatpush.msra.mxu0 0.0
        %505 = vmatpush.msra.mxu0 0.0
        %506 = vmatpush.msra.mxu0 0.0
        %507 = vmatpush.msra.mxu0 %v487
        %508 = vmatmul.f32.gmra.mxu0 %v490
        %v509 = vpop.f32.mrf.mxu0
        %v510 = vadd.f32 0.0, %v509
        %511 = vdwg.mxu0
        %513 = vrot.lane.b32.xlu0 %v510, 8
        %v514 = vpop.permute.xlu0 %513
        %vm516 = vcmask 130112
        %517 = vst.msk [vmem:[#allocation2] sm:$0xff] %vm516, %v514
        %518 = vrot.lane.b32.xlu0 %v315, 112
        %v519 = vpop.permute.xlu0 %518
        %520 = vrot.lane.b32.xlu0 %v335, 112
        %v521 = vpop.permute.xlu0 %520
        %v522 = vsel %vm358, %v519, 0
        %v524 = vsel %vm358, %v521, 0
        %526 = vmatpush.xpose.msra.mxu0 0.0
        %527 = vmatpush.xpose.msra.mxu0 0.0
        %528 = vmatpush.xpose.msra.mxu0 0.0
        %529 = vmatpush.xpose.msra.mxu0 0.0
        %530 = vmatpush.xpose.msra.mxu0 0.0
        %531 = vmatpush.xpose.msra.mxu0 0.0
        %532 = vmatpush.xpose.msra.mxu0 0.0
        %533 = vmatpush.xpose.msra.mxu0 0.0
        %534 = vmatpush.xpose.msra.mxu0 0.0
        %535 = vmatpush.xpose.msra.mxu0 0.0
        %536 = vmatpush.xpose.msra.mxu0 0.0
        %537 = vmatpush.xpose.msra.mxu0 0.0
        %538 = vmatpush.xpose.msra.mxu0 0.0
        %539 = vmatpush.xpose.msra.mxu0 0.0
        %540 = vmatpush.xpose.msra.mxu0 0.0
        %541 = vmatpush.xpose.msra.mxu0 %v524
        %542 = vmatmul.f32.gmra.mxu0 %v522
        %v543 = vpop.f32.mrf.mxu0
        %v544 = vadd.f32 0.0, %v543
        %545 = vdwg.mxu0
        %v546 = vsel %vm358, %v544, -inf
        %547 = vmax.xlane.f32.xlu0 %v546
        %v548 = vpop.xlane.xlu0 %547
        %v549 = vsub.f32 %v544, %v548
        %v550 = vmul.f32 %v549, 1.442695
        %v551 = vpow.pop %v550
        %v552 = vsel %vm358, %v551, 0.0
        %553 = vadd.xlane.f32.xlu0 %v552
        %v554 = vpop.xlane.xlu0 %553
        %v555 = vrcp.pop %v554
        %v556 = vmul.f32 %v554, %v555
        %v557 = vsub.f32 1.0, %v556
        %v558 = vmul.f32 %v555, %v557
        %v559 = vadd.f32 %v555, %v558
        %vm560 = vweird.f32 %v554
        %vm561 = vweird.f32 %v555
        %vm562 = vmor %vm560, %vm561
        %v563 = vsel %vm562, %v555, %v559
        %v564 = vand.u32 2147483647, %v554
        %vm565 = vcmp.eq.f32.partialorder %v564, 8.507059e+37
        %v566 = vand.u32 %v554, 2147483648
        %v567 = vor.u32 1.1754944e-38, %v566
        %v568 = vsel %vm565, %v567, %v563
        %v569 = vmul.f32 %v551, %v568
        %570 = vrot.lane.b32.xlu0 %v355, 112
        %v571 = vpop.permute.xlu0 %570
        %v574 = vsel %vm358, %v569, 0
        %576 = vmatpush.msra.mxu0 0.0
        %577 = vmatpush.msra.mxu0 0.0
        %578 = vmatpush.msra.mxu0 0.0
        %579 = vmatpush.msra.mxu0 0.0
        %580 = vmatpush.msra.mxu0 0.0
        %581 = vmatpush.msra.mxu0 0.0
        %582 = vmatpush.msra.mxu0 0.0
        %583 = vmatpush.msra.mxu0 0.0
        %584 = vmatpush.msra.mxu0 0.0
        %585 = vmatpush.msra.mxu0 0.0
        %586 = vmatpush.msra.mxu0 0.0
        %587 = vmatpush.msra.mxu0 0.0
        %588 = vmatpush.msra.mxu0 0.0
        %589 = vmatpush.msra.mxu0 0.0
        %590 = vmatpush.msra.mxu0 0.0
        %591 = vmatpush.msra.mxu0 %v571
        %592 = vmatmul.f32.gmra.mxu0 %v574
        %v593 = vpop.f32.mrf.mxu0
        %v594 = vadd.f32 0.0, %v593
        %595 = vdwg.mxu0
        %597 = vrot.lane.b32.xlu0 %v594, 16
        %v598 = vpop.permute.xlu0 %597
        %vm600 = vcmask 195712
        %601 = vst.msk [vmem:[#allocation2] sm:$0xff] %vm600, %v598
        %602 = vrot.lane.b32.xlu0 %v315, 104
        %v603 = vpop.permute.xlu0 %602
        %604 = vrot.lane.b32.xlu0 %v335, 104
        %v605 = vpop.permute.xlu0 %604
        %v606 = vsel %vm358, %v603, 0
        %v608 = vsel %vm358, %v605, 0
        %610 = vmatpush.xpose.msra.mxu0 0.0
        %611 = vmatpush.xpose.msra.mxu0 0.0
        %612 = vmatpush.xpose.msra.mxu0 0.0
        %613 = vmatpush.xpose.msra.mxu0 0.0
        %614 = vmatpush.xpose.msra.mxu0 0.0
        %615 = vmatpush.xpose.msra.mxu0 0.0
        %616 = vmatpush.xpose.msra.mxu0 0.0
        %617 = vmatpush.xpose.msra.mxu0 0.0
        %618 = vmatpush.xpose.msra.mxu0 0.0
        %619 = vmatpush.xpose.msra.mxu0 0.0
        %620 = vmatpush.xpose.msra.mxu0 0.0
        %621 = vmatpush.xpose.msra.mxu0 0.0
        %622 = vmatpush.xpose.msra.mxu0 0.0
        %623 = vmatpush.xpose.msra.mxu0 0.0
        %624 = vmatpush.xpose.msra.mxu0 0.0
        %625 = vmatpush.xpose.msra.mxu0 %v608
        %626 = vmatmul.f32.gmra.mxu0 %v606
        %v627 = vpop.f32.mrf.mxu0
        %v628 = vadd.f32 0.0, %v627
        %629 = vdwg.mxu0
        %v630 = vsel %vm358, %v628, -inf
        %631 = vmax.xlane.f32.xlu0 %v630
        %v632 = vpop.xlane.xlu0 %631
        %v633 = vsub.f32 %v628, %v632
        %v634 = vmul.f32 %v633, 1.442695
        %v635 = vpow.pop %v634
        %v636 = vsel %vm358, %v635, 0.0
        %637 = vadd.xlane.f32.xlu0 %v636
        %v638 = vpop.xlane.xlu0 %637
        %v639 = vrcp.pop %v638
        %v640 = vmul.f32 %v638, %v639
        %v641 = vsub.f32 1.0, %v640
        %v642 = vmul.f32 %v639, %v641
        %v643 = vadd.f32 %v639, %v642
        %vm644 = vweird.f32 %v638
        %vm645 = vweird.f32 %v639
        %vm646 = vmor %vm644, %vm645
        %v647 = vsel %vm646, %v639, %v643
        %v648 = vand.u32 2147483647, %v638
        %vm649 = vcmp.eq.f32.partialorder %v648, 8.507059e+37
        %v650 = vand.u32 %v638, 2147483648
        %v651 = vor.u32 1.1754944e-38, %v650
        %v652 = vsel %vm649, %v651, %v647
        %v653 = vmul.f32 %v635, %v652
        %654 = vrot.lane.b32.xlu0 %v355, 104
        %v655 = vpop.permute.xlu0 %654
        %v658 = vsel %vm358, %v653, 0
        %660 = vmatpush.msra.mxu0 0.0
        %661 = vmatpush.msra.mxu0 0.0
        %662 = vmatpush.msra.mxu0 0.0
        %663 = vmatpush.msra.mxu0 0.0
        %664 = vmatpush.msra.mxu0 0.0
        %665 = vmatpush.msra.mxu0 0.0
        %666 = vmatpush.msra.mxu0 0.0
        %667 = vmatpush.msra.mxu0 0.0
        %668 = vmatpush.msra.mxu0 0.0
        %669 = vmatpush.msra.mxu0 0.0
        %670 = vmatpush.msra.mxu0 0.0
        %671 = vmatpush.msra.mxu0 0.0
        %672 = vmatpush.msra.mxu0 0.0
        %673 = vmatpush.msra.mxu0 0.0
        %674 = vmatpush.msra.mxu0 0.0
        %675 = vmatpush.msra.mxu0 %v655
        %676 = vmatmul.f32.gmra.mxu0 %v658
        %v677 = vpop.f32.mrf.mxu0
        %v678 = vadd.f32 0.0, %v677
        %679 = vdwg.mxu0
        %681 = vrot.lane.b32.xlu0 %v678, 24
        %v682 = vpop.permute.xlu0 %681
        %vm684 = vcmask 261312
        %685 = vst.msk [vmem:[#allocation2] sm:$0xff] %vm684, %v682
        %v686 = vld [vmem:[#allocation2] sm:$0xff]
        %v687 = vld [vmem:[#allocation8] sm:$0xff]
        %v688 = vld [vmem:[#allocation8 + $0x8] sm:$0xff]
        %v689 = vld [vmem:[#allocation8 + $0x10] sm:$0xff]
        %v690 = vld [vmem:[#allocation8 + $0x18] sm:$0xff]
        %v691 = vld [vmem:[#allocation8 + $0x20] sm:$0xff]
        %v692 = vld [vmem:[#allocation8 + $0x28] sm:$0xff]
        %v693 = vld [vmem:[#allocation8 + $0x30] sm:$0xff]
        %v694 = vld [vmem:[#allocation8 + $0x38] sm:$0xff]
        %v695 = vld [vmem:[#allocation8 + $0x40] sm:$0xff]
        %v696 = vld [vmem:[#allocation8 + $0x48] sm:$0xff]
        %v697 = vld [vmem:[#allocation8 + $0x50] sm:$0xff]
        %v698 = vld [vmem:[#allocation8 + $0x58] sm:$0xff]
        %v699 = vld [vmem:[#allocation8 + $0x60] sm:$0xff]
        %v700 = vld [vmem:[#allocation8 + $0x68] sm:$0xff]
        %v701 = vld [vmem:[#allocation8 + $0x70] sm:$0xff]
        %v702 = vld [vmem:[#allocation8 + $0x78] sm:$0xff]
        %v703 = vld [vmem:[%s3] sm:$0x1]
        %v705 = vperm.slane %v703, 0
        %707 = vmatpush.msra.mxu0 %v702
        %708 = vmatpush.msra.mxu0 %v701
        %709 = vmatpush.msra.mxu0 %v700
        %710 = vmatpush.msra.mxu0 %v699
        %711 = vmatpush.msra.mxu0 %v698
        %712 = vmatpush.msra.mxu0 %v697
        %713 = vmatpush.msra.mxu0 %v696
        %714 = vmatpush.msra.mxu0 %v695
        %715 = vmatpush.msra.mxu0 %v694
        %716 = vmatpush.msra.mxu0 %v693
        %717 = vmatpush.msra.mxu0 %v692
        %718 = vmatpush.msra.mxu0 %v691
        %719 = vmatpush.msra.mxu0 %v690
        %720 = vmatpush.msra.mxu0 %v689
        %721 = vmatpush.msra.mxu0 %v688
        %722 = vmatpush.msra.mxu0 %v687
        %723 = vmatmul.f32.gmra.mxu0 %v686
        %v724 = vpop.f32.mrf.mxu0
        %v725 = vadd.f32 %v705, %v724
        %726 = vdwg.mxu0
        %v727 = vadd.f32 %v725, %v248
        %728 = vst [vmem:[%s247] sm:$0xff] %v727
        %s729 = sand.u32 %s119, 1
        %s730 = scalar_lea.sflag [#allocation5], %s729
        %s731 = sand.u32 %s119, 1
        %s732 = smul.addr %s731, 8
        %s733 = scalar_lea.vmem [#allocation9], %s732
        // Predicated region
        $region49: #{tpu_custom_call.1} parent=35 // pred_check
          %p734 = pneg %p129
        $region50: #{tpu_custom_call.1} parent=35 // pred_check_branch
          %736 = sbr.rel (%p734) target = $region52
        $region51: #{tpu_custom_call.1} parent=35 // pred_region
          %738 = vsyncadd %s730, 0
          %s739 = smul.addr %s22, 8
          %s740 = scalar_lea.hbm %s4, %s739
          %s742 = sshll.u32 %s733, 4
          %s743 = int_to_ptr.vmem [resolvable:$true] %s742
          %s744 = sshll.u32 %s740, 4
          %s745 = int_to_ptr.hbm [resolvable:$true] %s744
          %747 = dma.vmem_to_hbm [thread:$0]  %s743, 128, %s745, %s730
        $region52: #{tpu_custom_call.1} parent=35 // pred_fallthru
          _
      $region36: #{tpu_custom_call.1} parent=5 // pred_fallthru
        _
      %p748 = scmp.le.s32.totalorder 2, %s17
      // Predicated region
      $region53: #{tpu_custom_call.1} parent=5 // pred_check
        %p749 = pneg %p748
      $region54: #{tpu_custom_call.1} parent=5 // pred_check_branch
        %751 = sbr.rel (%p749) target = $region56
      $region55: #{tpu_custom_call.1} parent=5 // pred_region
        %s752 = ssub.s32 %s17, 2
        // Predicated region
        $region57: #{tpu_custom_call.1} parent=55 // pred_check
          %p753 = pneg %p135
        $region58: #{tpu_custom_call.1} parent=55 // pred_check_branch
          %755 = sbr.rel (%p753) target = $region60
        $region59: #{tpu_custom_call.1} parent=55 // pred_region
          %s756 = sand.u32 %s120, 1
          %s757 = scalar_lea.sflag [#allocation5], %s756
          %s758 = sand.u32 %s120, 1
          %s759 = smul.addr %s758, 8
          %s760 = scalar_lea.vmem [#allocation9], %s759
          %762 = dma.done %s757, 128
        $region60: #{tpu_custom_call.1} parent=55 // pred_fallthru
          _
      $region56: #{tpu_custom_call.1} parent=5 // pred_fallthru
        _
    $region6: #{tpu_custom_call.1} parent=1 // loop_footer
      %s21 = sadd.s32 1, %s17
    $region7: #{tpu_custom_call.1} parent=1 // loop_footer_branch
      %16 = sbr.rel target = $region3
    $region8: #{tpu_custom_call.1} parent=1 // loop_exit
      _
    %763 = vsyncpa [#allocation4], 1
    %s764 = scalar_lea.sflag [#allocation4], 1
    %765 = vsyncpa %s764, 1
    %766 = vsyncpa [#allocation7], 1
    %767 = vsyncpa [#allocation5], 1
    %s768 = scalar_lea.sflag [#allocation5], 1
    %769 = vsyncpa %s768, 1

</llo_original>
